<compile_context>
chip_gen: v7x
topology: tpu7x:2x2x1
jax: 0.10.0
libtpu: 0.0.40
codegen_flags: <defaults>
</compile_context>

<pallas_src>
import jax
import jax.numpy as jnp
from jax.experimental import pallas as pl
from jax.experimental.pallas import tpu as pltpu


def _edgeconv_kernel(x_ref, idx_ref, wa_ref, wb_ref, b_ref, o_ref):
    # x_ref:   [1, N, C]        full vertex features for this batch (channels last)
    # idx_ref: [2, 1, TN, K]    int32; [0] = neighbor idx (x_j), [1] = center idx (x_i)
    # wa_ref:  [C, Cout_pad]    (W[:, :C] - W[:, C:]).T, zero-padded columns
    # wb_ref:  [C, Cout_pad]    W[:, C:].T, zero-padded columns
    # b_ref:   [1, Cout_pad]
    # o_ref:   [1, TN, Cout_pad]
    x = x_ref[0]                                   # [N, C]
    N = x.shape[0]
    TN = o_ref.shape[1]
    K = idx_ref.shape[-1]
    Cp = o_ref.shape[-1]

    # Pointwise conv applied once per vertex (not per edge).
    y_a = jnp.dot(x, wa_ref[...], preferred_element_type=jnp.float32)   # [N, Cout_pad]
    y_b = jnp.dot(x, wb_ref[...], preferred_element_type=jnp.float32)   # [N, Cout_pad]

    idx_i = idx_ref[1, 0]                          # [TN, K]  centers   (edge_index[1])
    idx_j = idx_ref[0, 0]                          # [TN, K]  neighbors (edge_index[0])

    lane = jax.lax.broadcasted_iota(jnp.int32, (TN, N), 1)     # hoisted out of the k-loop
    bias = jnp.broadcast_to(b_ref[...], (TN, Cp))              # hoisted out of the k-loop

    # Running max over the K neighbors: peak live tensor is [TN, Cout_pad].
    acc = None
    for k in range(K):                             # K is small & static -> unrolled
        # One-hot gather of rows of y_a / y_b on the MXU.  An out-of-range index
        # yields an all-zero one-hot row (gathers zeros), same as the old kernel.
        oh_i = (idx_i[:, k:k + 1] == lane).astype(jnp.float32)           # [TN, N]
        oh_j = (idx_j[:, k:k + 1] == lane).astype(jnp.float32)           # [TN, N]
        h_k = (jnp.dot(oh_i, y_a, preferred_element_type=jnp.float32)
               + jnp.dot(oh_j, y_b, preferred_element_type=jnp.float32)
               + bias)                                                   # [TN, Cout_pad]
        h_k = jnp.maximum(h_k, 0.0)                                      # ReLU
        acc = h_k if acc is None else jnp.maximum(acc, h_k)
    o_ref[0] = acc.astype(o_ref.dtype)


def edge_conv3d(x, edge_index, weight, bias, *, tile_n=256):
    """x: [B, C, N, 1] f32, edge_index: [2, B, N, K] int, weight: [Cout, 2C], bias: [Cout]."""
    B, C, N, _ = x.shape
    K = edge_index.shape[-1]
    Cout = weight.shape[0]

    Cout_pad = ((Cout + 127) // 128) * 128         # lane-dense output stores
    TN = N if N <= tile_n else tile_n              # centers per grid step (mult. of 8 or == N)
    grid = (B, pl.cdiv(N, TN))

    # Layout glue (plain JAX): channels-last x; weights pre-split, transposed, padded.
    x_k = jnp.transpose(x[..., 0], (0, 2, 1)).astype(jnp.float32)        # [B, N, C]
    idx_k = edge_index.astype(jnp.int32)                                  # [2, B, N, K]
    w = weight.astype(jnp.float32)
    pad = ((0, 0), (0, Cout_pad - Cout))
    wa_k = jnp.pad(jnp.transpose(w[:, :C] - w[:, C:]), pad)               # [C, Cout_pad]
    wb_k = jnp.pad(jnp.transpose(w[:, C:]), pad)                          # [C, Cout_pad]
    b_k = jnp.pad(bias.astype(jnp.float32).reshape(1, Cout), pad)         # [1, Cout_pad]

    out = pl.pallas_call(
        _edgeconv_kernel,
        out_shape=jax.ShapeDtypeStruct((B, N, Cout_pad), jnp.float32),
        grid_spec=pltpu.PrefetchScalarGridSpec(
            num_scalar_prefetch=0,
            grid=grid,
            in_specs=[
                pl.BlockSpec((1, N, C), lambda b, t: (b, 0, 0)),          # x: resident per batch
                pl.BlockSpec((2, 1, TN, K), lambda b, t: (0, b, t, 0)),   # idx tile
                pl.BlockSpec((C, Cout_pad), lambda b, t: (0, 0)),         # wa: resident
                pl.BlockSpec((C, Cout_pad), lambda b, t: (0, 0)),         # wb: resident
                pl.BlockSpec((1, Cout_pad), lambda b, t: (0, 0)),         # bias: resident
            ],
            out_specs=pl.BlockSpec((1, TN, Cout_pad), lambda b, t: (b, t, 0)),
        ),
        compiler_params=pltpu.CompilerParams(
            dimension_semantics=("parallel", "parallel"),
            vmem_limit_bytes=32 * 1024 * 1024,     # fits scoped VMEM on v5e/v6e/v7x
        ),
    )(x_k, idx_k, wa_k, wb_k, b_k)                                        # [B, N, Cout_pad]

    # Slice off lane padding; back to PyTorch layout [B, Cout, N, 1].
    return jnp.transpose(out[..., :Cout], (0, 2, 1))[..., None]


def edge_conv3d_reference(x, edge_index, weight, bias):
    """Pure-JAX reference mirroring the PyTorch forward exactly."""
    B, C, N, _ = x.shape
    xs = x[..., 0]                                                        # [B, C, N]

    def gather(idx):                                                      # idx: [B, N, K]
        def one(xb, ib):                                                  # xb [C,N], ib [N,K]
            return xb[:, ib.reshape(-1)].reshape(C, *ib.shape)            # [C, N, K]
        return jax.vmap(one)(xs, idx)

    x_i = gather(edge_index[1])
    x_j = gather(edge_index[0])
    f = jnp.concatenate([x_i, x_j - x_i], axis=1)                         # [B, 2C, N, K]
    h = jnp.einsum('oc,bcnk->bonk', weight, f) + bias[None, :, None, None]
    h = jnp.maximum(h, 0.0)
    return jnp.max(h, axis=-1, keepdims=True)                             # [B, Cout, N, 1]


if __name__ == "__main__":
    B, C_in, C_out, N, K = 2, 4, 8, 16, 8

    key = jax.random.PRNGKey(0)
    k_x, k_idx, k_w, k_b = jax.random.split(key, 4)

    # Inputs (PyTorch-like layout): x [B, C, N, 1], edge_index [2, B, N, K].
    x = jax.random.normal(k_x, (B, C_in, N, 1), dtype=jnp.float32)
    nbr_idx = jax.random.randint(k_idx, (B, N, K), 0, N, dtype=jnp.int32)        # edge_index[0]
    ctr_idx = jnp.broadcast_to(jnp.arange(N, dtype=jnp.int32)[None, :, None],
                               (B, N, K))                                         # edge_index[1]
    edge_index = jnp.stack([nbr_idx, ctr_idx], axis=0)                            # [2, B, N, K]

    # Deterministic Conv(1x1) params: weight [Cout, 2*Cin], bias [Cout]
    # (PyTorch Conv3d weight [Cout, 2C, 1, 1, 1] with the trailing 1s squeezed).
    bound = 1.0 / jnp.sqrt(2.0 * C_in)
    weight = jax.random.uniform(k_w, (C_out, 2 * C_in), jnp.float32, -bound, bound)
    bias = jax.random.uniform(k_b, (C_out,), jnp.float32, -bound, bound)

    out = edge_conv3d(x, edge_index, weight, bias)
    out = jax.block_until_ready(out)

    ref = edge_conv3d_reference(x, edge_index, weight, bias)
    assert out.shape == (B, C_out, N, 1), out.shape
    assert jnp.allclose(out, ref, atol=1e-4, rtol=1e-4), float(jnp.max(jnp.abs(out - ref)))

    print("KERNEL_OK")
</pallas_src>

<mosaic_0001>
module attributes {stable_mosaic.version = 11 : i64} {
  func.func @_edgeconv_kernel(%arg0: i32, %arg1: i32, %arg2: memref<1x16x4xf32, #tpu.memory_space<vmem>>, %arg3: memref<2x1x16x8xi32, #tpu.memory_space<vmem>>, %arg4: memref<4x128xf32, #tpu.memory_space<vmem>>, %arg5: memref<4x128xf32, #tpu.memory_space<vmem>>, %arg6: memref<1x128xf32, #tpu.memory_space<vmem>>, %arg7: memref<1x16x128xf32, #tpu.memory_space<vmem>>) attributes {dimension_semantics = [#tpu.dimension_semantics<parallel>, #tpu.dimension_semantics<parallel>], iteration_bounds = array<i64: 2, 1>, scalar_prefetch = 0 : i64, scratch_operands = 0 : i64, tpu.core_type = #tpu.core_type<tc>, window_params = [{transform_indices = @transform_0, window_bounds = array<i64: 1, 16, 4>}, {transform_indices = @transform_1, window_bounds = array<i64: 2, 1, 16, 8>}, {pipeline_mode = #tpu.pipeline_mode<synchronous>, transform_indices = @transform_2, window_bounds = array<i64: 4, 128>}, {pipeline_mode = #tpu.pipeline_mode<synchronous>, transform_indices = @transform_3, window_bounds = array<i64: 4, 128>}, {pipeline_mode = #tpu.pipeline_mode<synchronous>, transform_indices = @transform_4, window_bounds = array<i64: 1, 128>}, {transform_indices = @transform_5, window_bounds = array<i64: 1, 16, 128>}]} {
    %c0 = arith.constant 0 : index
    %c0_0 = arith.constant 0 : index
    %c0_1 = arith.constant 0 : index
    %0 = vector.load %arg2[%c0, %c0_0, %c0_1] : memref<1x16x4xf32, #tpu.memory_space<vmem>>, vector<1x16x4xf32>
    %1 = vector.shape_cast %0 : vector<1x16x4xf32> to vector<16x4xf32>
    %c0_2 = arith.constant 0 : index
    %c0_3 = arith.constant 0 : index
    %2 = vector.load %arg4[%c0_2, %c0_3] : memref<4x128xf32, #tpu.memory_space<vmem>>, vector<4x128xf32>
    %cst = arith.constant dense<0.000000e+00> : vector<16x128xf32>
    %3 = tpu.matmul %1, %2, %cst {dimension_numbers = #tpu.dot_dimension_numbers<[1], [0], [0], [1], [0, 0, 1, 1], [], []>} : vector<16x4xf32>, vector<4x128xf32>, vector<16x128xf32> -> vector<16x128xf32>
    %c0_4 = arith.constant 0 : index
    %c0_5 = arith.constant 0 : index
    %4 = vector.load %arg5[%c0_4, %c0_5] : memref<4x128xf32, #tpu.memory_space<vmem>>, vector<4x128xf32>
    %cst_6 = arith.constant dense<0.000000e+00> : vector<16x128xf32>
    %5 = tpu.matmul %1, %4, %cst_6 {dimension_numbers = #tpu.dot_dimension_numbers<[1], [0], [0], [1], [0, 0, 1, 1], [], []>} : vector<16x4xf32>, vector<4x128xf32>, vector<16x128xf32> -> vector<16x128xf32>
    %c1 = arith.constant 1 : index
    %c0_7 = arith.constant 0 : index
    %c0_8 = arith.constant 0 : index
    %c0_9 = arith.constant 0 : index
    %6 = vector.load %arg3[%c1, %c0_7, %c0_8, %c0_9] : memref<2x1x16x8xi32, #tpu.memory_space<vmem>>, vector<1x1x16x8xi32>
    %7 = vector.shape_cast %6 : vector<1x1x16x8xi32> to vector<16x8xi32>
    %c0_10 = arith.constant 0 : index
    %c0_11 = arith.constant 0 : index
    %c0_12 = arith.constant 0 : index
    %c0_13 = arith.constant 0 : index
    %8 = vector.load %arg3[%c0_10, %c0_11, %c0_12, %c0_13] : memref<2x1x16x8xi32, #tpu.memory_space<vmem>>, vector<1x1x16x8xi32>
    %9 = vector.shape_cast %8 : vector<1x1x16x8xi32> to vector<16x8xi32>
    %10 = tpu.iota {dimensions = array<i32: 1>} : vector<16x16xi32>
    %c0_14 = arith.constant 0 : index
    %c0_15 = arith.constant 0 : index
    %11 = vector.load %arg6[%c0_14, %c0_15] : memref<1x128xf32, #tpu.memory_space<vmem>>, vector<1x128xf32>
    %12 = vector.shape_cast %11 : vector<1x128xf32> to vector<1x128xf32>
    %13 = vector.broadcast %12 : vector<1x128xf32> to vector<16x128xf32>
    %14 = vector.extract_strided_slice %7 {offsets = [0, 0], sizes = [16, 1], strides = [1, 1]} : vector<16x8xi32> to vector<16x1xi32>
    %15 = vector.broadcast %14 : vector<16x1xi32> to vector<16x16xi32>
    %16 = arith.cmpi eq, %15, %10 : vector<16x16xi32>
    %17 = arith.extui %16 : vector<16x16xi1> to vector<16x16xi32>
    %18 = arith.sitofp %17 : vector<16x16xi32> to vector<16x16xf32>
    %19 = vector.extract_strided_slice %9 {offsets = [0, 0], sizes = [16, 1], strides = [1, 1]} : vector<16x8xi32> to vector<16x1xi32>
    %20 = vector.broadcast %19 : vector<16x1xi32> to vector<16x16xi32>
    %21 = arith.cmpi eq, %20, %10 : vector<16x16xi32>
    %22 = arith.extui %21 : vector<16x16xi1> to vector<16x16xi32>
    %23 = arith.sitofp %22 : vector<16x16xi32> to vector<16x16xf32>
    %cst_16 = arith.constant dense<0.000000e+00> : vector<16x128xf32>
    %24 = tpu.matmul %18, %3, %cst_16 {dimension_numbers = #tpu.dot_dimension_numbers<[1], [0], [0], [1], [0, 0, 1, 1], [], []>} : vector<16x16xf32>, vector<16x128xf32>, vector<16x128xf32> -> vector<16x128xf32>
    %cst_17 = arith.constant dense<0.000000e+00> : vector<16x128xf32>
    %25 = tpu.matmul %23, %5, %cst_17 {dimension_numbers = #tpu.dot_dimension_numbers<[1], [0], [0], [1], [0, 0, 1, 1], [], []>} : vector<16x16xf32>, vector<16x128xf32>, vector<16x128xf32> -> vector<16x128xf32>
    %26 = arith.addf %24, %25 : vector<16x128xf32>
    %27 = arith.addf %26, %13 : vector<16x128xf32>
    %cst_18 = arith.constant 0.000000e+00 : f32
    %28 = vector.broadcast %cst_18 : f32 to vector<16x128xf32>
    %29 = arith.maximumf %27, %28 : vector<16x128xf32>
    %30 = vector.extract_strided_slice %7 {offsets = [0, 1], sizes = [16, 1], strides = [1, 1]} : vector<16x8xi32> to vector<16x1xi32>
    %31 = vector.broadcast %30 : vector<16x1xi32> to vector<16x16xi32>
    %32 = arith.cmpi eq, %31, %10 : vector<16x16xi32>
    %33 = arith.extui %32 : vector<16x16xi1> to vector<16x16xi32>
    %34 = arith.sitofp %33 : vector<16x16xi32> to vector<16x16xf32>
    %35 = vector.extract_strided_slice %9 {offsets = [0, 1], sizes = [16, 1], strides = [1, 1]} : vector<16x8xi32> to vector<16x1xi32>
    %36 = vector.broadcast %35 : vector<16x1xi32> to vector<16x16xi32>
    %37 = arith.cmpi eq, %36, %10 : vector<16x16xi32>
    %38 = arith.extui %37 : vector<16x16xi1> to vector<16x16xi32>
    %39 = arith.sitofp %38 : vector<16x16xi32> to vector<16x16xf32>
    %cst_19 = arith.constant dense<0.000000e+00> : vector<16x128xf32>
    %40 = tpu.matmul %34, %3, %cst_19 {dimension_numbers = #tpu.dot_dimension_numbers<[1], [0], [0], [1], [0, 0, 1, 1], [], []>} : vector<16x16xf32>, vector<16x128xf32>, vector<16x128xf32> -> vector<16x128xf32>
    %cst_20 = arith.constant dense<0.000000e+00> : vector<16x128xf32>
    %41 = tpu.matmul %39, %5, %cst_20 {dimension_numbers = #tpu.dot_dimension_numbers<[1], [0], [0], [1], [0, 0, 1, 1], [], []>} : vector<16x16xf32>, vector<16x128xf32>, vector<16x128xf32> -> vector<16x128xf32>
    %42 = arith.addf %40, %41 : vector<16x128xf32>
    %43 = arith.addf %42, %13 : vector<16x128xf32>
    %cst_21 = arith.constant 0.000000e+00 : f32
    %44 = vector.broadcast %cst_21 : f32 to vector<16x128xf32>
    %45 = arith.maximumf %43, %44 : vector<16x128xf32>
    %46 = arith.maximumf %29, %45 : vector<16x128xf32>
    %47 = vector.extract_strided_slice %7 {offsets = [0, 2], sizes = [16, 1], strides = [1, 1]} : vector<16x8xi32> to vector<16x1xi32>
    %48 = vector.broadcast %47 : vector<16x1xi32> to vector<16x16xi32>
    %49 = arith.cmpi eq, %48, %10 : vector<16x16xi32>
    %50 = arith.extui %49 : vector<16x16xi1> to vector<16x16xi32>
    %51 = arith.sitofp %50 : vector<16x16xi32> to vector<16x16xf32>
    %52 = vector.extract_strided_slice %9 {offsets = [0, 2], sizes = [16, 1], strides = [1, 1]} : vector<16x8xi32> to vector<16x1xi32>
    %53 = vector.broadcast %52 : vector<16x1xi32> to vector<16x16xi32>
    %54 = arith.cmpi eq, %53, %10 : vector<16x16xi32>
    %55 = arith.extui %54 : vector<16x16xi1> to vector<16x16xi32>
    %56 = arith.sitofp %55 : vector<16x16xi32> to vector<16x16xf32>
    %cst_22 = arith.constant dense<0.000000e+00> : vector<16x128xf32>
    %57 = tpu.matmul %51, %3, %cst_22 {dimension_numbers = #tpu.dot_dimension_numbers<[1], [0], [0], [1], [0, 0, 1, 1], [], []>} : vector<16x16xf32>, vector<16x128xf32>, vector<16x128xf32> -> vector<16x128xf32>
    %cst_23 = arith.constant dense<0.000000e+00> : vector<16x128xf32>
    %58 = tpu.matmul %56, %5, %cst_23 {dimension_numbers = #tpu.dot_dimension_numbers<[1], [0], [0], [1], [0, 0, 1, 1], [], []>} : vector<16x16xf32>, vector<16x128xf32>, vector<16x128xf32> -> vector<16x128xf32>
    %59 = arith.addf %57, %58 : vector<16x128xf32>
    %60 = arith.addf %59, %13 : vector<16x128xf32>
    %cst_24 = arith.constant 0.000000e+00 : f32
    %61 = vector.broadcast %cst_24 : f32 to vector<16x128xf32>
    %62 = arith.maximumf %60, %61 : vector<16x128xf32>
    %63 = arith.maximumf %46, %62 : vector<16x128xf32>
    %64 = vector.extract_strided_slice %7 {offsets = [0, 3], sizes = [16, 1], strides = [1, 1]} : vector<16x8xi32> to vector<16x1xi32>
    %65 = vector.broadcast %64 : vector<16x1xi32> to vector<16x16xi32>
    %66 = arith.cmpi eq, %65, %10 : vector<16x16xi32>
    %67 = arith.extui %66 : vector<16x16xi1> to vector<16x16xi32>
    %68 = arith.sitofp %67 : vector<16x16xi32> to vector<16x16xf32>
    %69 = vector.extract_strided_slice %9 {offsets = [0, 3], sizes = [16, 1], strides = [1, 1]} : vector<16x8xi32> to vector<16x1xi32>
    %70 = vector.broadcast %69 : vector<16x1xi32> to vector<16x16xi32>
    %71 = arith.cmpi eq, %70, %10 : vector<16x16xi32>
    %72 = arith.extui %71 : vector<16x16xi1> to vector<16x16xi32>
    %73 = arith.sitofp %72 : vector<16x16xi32> to vector<16x16xf32>
    %cst_25 = arith.constant dense<0.000000e+00> : vector<16x128xf32>
    %74 = tpu.matmul %68, %3, %cst_25 {dimension_numbers = #tpu.dot_dimension_numbers<[1], [0], [0], [1], [0, 0, 1, 1], [], []>} : vector<16x16xf32>, vector<16x128xf32>, vector<16x128xf32> -> vector<16x128xf32>
    %cst_26 = arith.constant dense<0.000000e+00> : vector<16x128xf32>
    %75 = tpu.matmul %73, %5, %cst_26 {dimension_numbers = #tpu.dot_dimension_numbers<[1], [0], [0], [1], [0, 0, 1, 1], [], []>} : vector<16x16xf32>, vector<16x128xf32>, vector<16x128xf32> -> vector<16x128xf32>
    %76 = arith.addf %74, %75 : vector<16x128xf32>
    %77 = arith.addf %76, %13 : vector<16x128xf32>
    %cst_27 = arith.constant 0.000000e+00 : f32
    %78 = vector.broadcast %cst_27 : f32 to vector<16x128xf32>
    %79 = arith.maximumf %77, %78 : vector<16x128xf32>
    %80 = arith.maximumf %63, %79 : vector<16x128xf32>
    %81 = vector.extract_strided_slice %7 {offsets = [0, 4], sizes = [16, 1], strides = [1, 1]} : vector<16x8xi32> to vector<16x1xi32>
    %82 = vector.broadcast %81 : vector<16x1xi32> to vector<16x16xi32>
    %83 = arith.cmpi eq, %82, %10 : vector<16x16xi32>
    %84 = arith.extui %83 : vector<16x16xi1> to vector<16x16xi32>
    %85 = arith.sitofp %84 : vector<16x16xi32> to vector<16x16xf32>
    %86 = vector.extract_strided_slice %9 {offsets = [0, 4], sizes = [16, 1], strides = [1, 1]} : vector<16x8xi32> to vector<16x1xi32>
    %87 = vector.broadcast %86 : vector<16x1xi32> to vector<16x16xi32>
    %88 = arith.cmpi eq, %87, %10 : vector<16x16xi32>
    %89 = arith.extui %88 : vector<16x16xi1> to vector<16x16xi32>
    %90 = arith.sitofp %89 : vector<16x16xi32> to vector<16x16xf32>
    %cst_28 = arith.constant dense<0.000000e+00> : vector<16x128xf32>
    %91 = tpu.matmul %85, %3, %cst_28 {dimension_numbers = #tpu.dot_dimension_numbers<[1], [0], [0], [1], [0, 0, 1, 1], [], []>} : vector<16x16xf32>, vector<16x128xf32>, vector<16x128xf32> -> vector<16x128xf32>
    %cst_29 = arith.constant dense<0.000000e+00> : vector<16x128xf32>
    %92 = tpu.matmul %90, %5, %cst_29 {dimension_numbers = #tpu.dot_dimension_numbers<[1], [0], [0], [1], [0, 0, 1, 1], [], []>} : vector<16x16xf32>, vector<16x128xf32>, vector<16x128xf32> -> vector<16x128xf32>
    %93 = arith.addf %91, %92 : vector<16x128xf32>
    %94 = arith.addf %93, %13 : vector<16x128xf32>
    %cst_30 = arith.constant 0.000000e+00 : f32
    %95 = vector.broadcast %cst_30 : f32 to vector<16x128xf32>
    %96 = arith.maximumf %94, %95 : vector<16x128xf32>
    %97 = arith.maximumf %80, %96 : vector<16x128xf32>
    %98 = vector.extract_strided_slice %7 {offsets = [0, 5], sizes = [16, 1], strides = [1, 1]} : vector<16x8xi32> to vector<16x1xi32>
    %99 = vector.broadcast %98 : vector<16x1xi32> to vector<16x16xi32>
    %100 = arith.cmpi eq, %99, %10 : vector<16x16xi32>
    %101 = arith.extui %100 : vector<16x16xi1> to vector<16x16xi32>
    %102 = arith.sitofp %101 : vector<16x16xi32> to vector<16x16xf32>
    %103 = vector.extract_strided_slice %9 {offsets = [0, 5], sizes = [16, 1], strides = [1, 1]} : vector<16x8xi32> to vector<16x1xi32>
    %104 = vector.broadcast %103 : vector<16x1xi32> to vector<16x16xi32>
    %105 = arith.cmpi eq, %104, %10 : vector<16x16xi32>
    %106 = arith.extui %105 : vector<16x16xi1> to vector<16x16xi32>
    %107 = arith.sitofp %106 : vector<16x16xi32> to vector<16x16xf32>
    %cst_31 = arith.constant dense<0.000000e+00> : vector<16x128xf32>
    %108 = tpu.matmul %102, %3, %cst_31 {dimension_numbers = #tpu.dot_dimension_numbers<[1], [0], [0], [1], [0, 0, 1, 1], [], []>} : vector<16x16xf32>, vector<16x128xf32>, vector<16x128xf32> -> vector<16x128xf32>
    %cst_32 = arith.constant dense<0.000000e+00> : vector<16x128xf32>
    %109 = tpu.matmul %107, %5, %cst_32 {dimension_numbers = #tpu.dot_dimension_numbers<[1], [0], [0], [1], [0, 0, 1, 1], [], []>} : vector<16x16xf32>, vector<16x128xf32>, vector<16x128xf32> -> vector<16x128xf32>
    %110 = arith.addf %108, %109 : vector<16x128xf32>
    %111 = arith.addf %110, %13 : vector<16x128xf32>
    %cst_33 = arith.constant 0.000000e+00 : f32
    %112 = vector.broadcast %cst_33 : f32 to vector<16x128xf32>
    %113 = arith.maximumf %111, %112 : vector<16x128xf32>
    %114 = arith.maximumf %97, %113 : vector<16x128xf32>
    %115 = vector.extract_strided_slice %7 {offsets = [0, 6], sizes = [16, 1], strides = [1, 1]} : vector<16x8xi32> to vector<16x1xi32>
    %116 = vector.broadcast %115 : vector<16x1xi32> to vector<16x16xi32>
    %117 = arith.cmpi eq, %116, %10 : vector<16x16xi32>
    %118 = arith.extui %117 : vector<16x16xi1> to vector<16x16xi32>
    %119 = arith.sitofp %118 : vector<16x16xi32> to vector<16x16xf32>
    %120 = vector.extract_strided_slice %9 {offsets = [0, 6], sizes = [16, 1], strides = [1, 1]} : vector<16x8xi32> to vector<16x1xi32>
    %121 = vector.broadcast %120 : vector<16x1xi32> to vector<16x16xi32>
    %122 = arith.cmpi eq, %121, %10 : vector<16x16xi32>
    %123 = arith.extui %122 : vector<16x16xi1> to vector<16x16xi32>
    %124 = arith.sitofp %123 : vector<16x16xi32> to vector<16x16xf32>
    %cst_34 = arith.constant dense<0.000000e+00> : vector<16x128xf32>
    %125 = tpu.matmul %119, %3, %cst_34 {dimension_numbers = #tpu.dot_dimension_numbers<[1], [0], [0], [1], [0, 0, 1, 1], [], []>} : vector<16x16xf32>, vector<16x128xf32>, vector<16x128xf32> -> vector<16x128xf32>
    %cst_35 = arith.constant dense<0.000000e+00> : vector<16x128xf32>
    %126 = tpu.matmul %124, %5, %cst_35 {dimension_numbers = #tpu.dot_dimension_numbers<[1], [0], [0], [1], [0, 0, 1, 1], [], []>} : vector<16x16xf32>, vector<16x128xf32>, vector<16x128xf32> -> vector<16x128xf32>
    %127 = arith.addf %125, %126 : vector<16x128xf32>
    %128 = arith.addf %127, %13 : vector<16x128xf32>
    %cst_36 = arith.constant 0.000000e+00 : f32
    %129 = vector.broadcast %cst_36 : f32 to vector<16x128xf32>
    %130 = arith.maximumf %128, %129 : vector<16x128xf32>
    %131 = arith.maximumf %114, %130 : vector<16x128xf32>
    %132 = vector.extract_strided_slice %7 {offsets = [0, 7], sizes = [16, 1], strides = [1, 1]} : vector<16x8xi32> to vector<16x1xi32>
    %133 = vector.broadcast %132 : vector<16x1xi32> to vector<16x16xi32>
    %134 = arith.cmpi eq, %133, %10 : vector<16x16xi32>
    %135 = arith.extui %134 : vector<16x16xi1> to vector<16x16xi32>
    %136 = arith.sitofp %135 : vector<16x16xi32> to vector<16x16xf32>
    %137 = vector.extract_strided_slice %9 {offsets = [0, 7], sizes = [16, 1], strides = [1, 1]} : vector<16x8xi32> to vector<16x1xi32>
    %138 = vector.broadcast %137 : vector<16x1xi32> to vector<16x16xi32>
    %139 = arith.cmpi eq, %138, %10 : vector<16x16xi32>
    %140 = arith.extui %139 : vector<16x16xi1> to vector<16x16xi32>
    %141 = arith.sitofp %140 : vector<16x16xi32> to vector<16x16xf32>
    %cst_37 = arith.constant dense<0.000000e+00> : vector<16x128xf32>
    %142 = tpu.matmul %136, %3, %cst_37 {dimension_numbers = #tpu.dot_dimension_numbers<[1], [0], [0], [1], [0, 0, 1, 1], [], []>} : vector<16x16xf32>, vector<16x128xf32>, vector<16x128xf32> -> vector<16x128xf32>
    %cst_38 = arith.constant dense<0.000000e+00> : vector<16x128xf32>
    %143 = tpu.matmul %141, %5, %cst_38 {dimension_numbers = #tpu.dot_dimension_numbers<[1], [0], [0], [1], [0, 0, 1, 1], [], []>} : vector<16x16xf32>, vector<16x128xf32>, vector<16x128xf32> -> vector<16x128xf32>
    %144 = arith.addf %142, %143 : vector<16x128xf32>
    %145 = arith.addf %144, %13 : vector<16x128xf32>
    %cst_39 = arith.constant 0.000000e+00 : f32
    %146 = vector.broadcast %cst_39 : f32 to vector<16x128xf32>
    %147 = arith.maximumf %145, %146 : vector<16x128xf32>
    %148 = arith.maximumf %131, %147 : vector<16x128xf32>
    %c0_40 = arith.constant 0 : index
    %c0_41 = arith.constant 0 : index
    %c0_42 = arith.constant 0 : index
    %149 = vector.load %arg7[%c0_40, %c0_41, %c0_42] : memref<1x16x128xf32, #tpu.memory_space<vmem>>, vector<1x16x128xf32>
    %150 = vector.shape_cast %149 : vector<1x16x128xf32> to vector<16x128xf32>
    %151 = vector.shape_cast %148 : vector<16x128xf32> to vector<1x16x128xf32>
    tpu.vector_store %arg7[%c0_40, %c0_41, %c0_42], %151 {strides = array<i32>} : memref<1x16x128xf32, #tpu.memory_space<vmem>>, vector<1x16x128xf32>,
    return
  }
  func.func @transform_0(%arg0: i32, %arg1: i32) -> (i32, i32, i32) {
    %c0_i32 = arith.constant 0 : i32
    %c0_i32_0 = arith.constant 0 : i32
    %c0_i32_1 = arith.constant 0 : i32
    return %arg0, %c0_i32, %c0_i32_0 : i32, i32, i32
  }
  func.func @transform_1(%arg0: i32, %arg1: i32) -> (i32, i32, i32, i32) {
    %c0_i32 = arith.constant 0 : i32
    %c0_i32_0 = arith.constant 0 : i32
    %c0_i32_1 = arith.constant 0 : i32
    return %c0_i32, %arg0, %arg1, %c0_i32_0 : i32, i32, i32, i32
  }
  func.func @transform_2(%arg0: i32, %arg1: i32) -> (i32, i32) {
    %c0_i32 = arith.constant 0 : i32
    %c0_i32_0 = arith.constant 0 : i32
    %c0_i32_1 = arith.constant 0 : i32
    return %c0_i32, %c0_i32_0 : i32, i32
  }
  func.func @transform_3(%arg0: i32, %arg1: i32) -> (i32, i32) {
    %c0_i32 = arith.constant 0 : i32
    %c0_i32_0 = arith.constant 0 : i32
    %c0_i32_1 = arith.constant 0 : i32
    return %c0_i32, %c0_i32_0 : i32, i32
  }
  func.func @transform_4(%arg0: i32, %arg1: i32) -> (i32, i32) {
    %c0_i32 = arith.constant 0 : i32
    %c0_i32_0 = arith.constant 0 : i32
    %c0_i32_1 = arith.constant 0 : i32
    return %c0_i32, %c0_i32_0 : i32, i32
  }
  func.func @transform_5(%arg0: i32, %arg1: i32) -> (i32, i32, i32) {
    %c0_i32 = arith.constant 0 : i32
    %c0_i32_0 = arith.constant 0 : i32
    return %arg0, %arg1, %c0_i32 : i32, i32, i32
  }
}

</mosaic_0001>

<llo_original>
// kernel: tpu_custom_call.1
$region0: #{tpu_custom_call.1}
  #allocation0 [shape = 'u32[]', space=smem, size = 0x4, offset = 0x4, fixed_abs, tag = 'smem constant byte address 0x4 - core index']
  #allocation1 [shape = 'u32[144,128]{1,0:T(1,128)}', space=vmem, size = 0x12000, scoped, tag = 'internal scratch']
  %s0 = inlined_call_operand.vmem [shape: f32[2,16,4], index: 0, kind: input, shape index: {}]
  %s1 = inlined_call_operand.vmem [shape: s32[2,2,16,8], index: 1, kind: input, shape index: {}]
  %s2 = inlined_call_operand.vmem [shape: f32[4,128], index: 2, kind: input, shape index: {}]
  %s3 = inlined_call_operand.vmem [shape: f32[4,128], index: 3, kind: input, shape index: {}]
  %s4 = inlined_call_operand.vmem [shape: f32[1,128], index: 4, kind: input, shape index: {}]
  %s5 = inlined_call_operand.hbm [shape: f32[2,16,128], index: 5, kind: output, shape index: {}]
  %s6 = sld [smem:[#allocation0]]
  $region91: #{tpu_custom_call.1} parent=0
    _
  %s8 = ssub.s32 1, %s6
  %s9 = scalar_select 0, %s8, %s6
  $region1: #{tpu_custom_call.1} parent=0
    #allocation2 [shape = 'u8[32768]{0}', space=vmem, size = 0x8000, scoped, tag = 'input window, operand 1']
    #allocation3 [shape = 'u8[16384]{0}', space=vmem, size = 0x4000, scoped, tag = 'output window, operand 0']
    #allocation4 [shape = 's32[2]{0}', space=sflag, size = 0x8, scoped, tag = 'scoped memory for tpu_custom_call.1']
    %10 = vsyncpa [#allocation4], 0
    %s11 = scalar_lea.sflag [#allocation4], 1
    %12 = vsyncpa %s11, 0
    loop: start=0, step=1, limit=4
    $region2: #{tpu_custom_call.1} parent=1 // loop_pre_header
      _
    $region3: #{tpu_custom_call.1} parent=1 // loop_header
      %s14 = sphi 0, %s18
      %p15 = scmp.ge.s32.totalorder %s14, 4
      %s21 = sphi 0, %s33
      %s22 = sphi 0, %s29
      %s23 = sphi 0, %s21
      %s24 = sphi 0, %s22
      %s25 = sphi 0, %s23
      %s26 = sphi 0, %s24
      %s36 = sphi 0, %s38
      %s39 = sphi 0, %s36
      %s40 = sphi 0, %s39
      %s56 = sphi 0, %s40
      %s64 = sphi 0, %s66
      %s67 = sphi 0, %s64
      %s68 = sphi 0, %s67
      %s84 = sphi 0, %s68
      %s88 = sphi 0, %s88
      %s90 = sphi 0, %s88
      %s91 = sphi 0, %s90
      %s105 = sphi 0, %s91
      %s109 = sphi 0, %s109
      %s111 = sphi 0, %s109
      %s112 = sphi 0, %s111
      %s126 = sphi 0, %s112
      %s130 = sphi 0, %s130
      %s132 = sphi 0, %s130
      %s133 = sphi 0, %s132
      %s147 = sphi 0, %s133
      %s155 = sphi 0, %s157
      %s158 = sphi 0, %s155
      %s159 = sphi 0, %s158
      %s175 = sphi 0, %s159
    $region4: #{tpu_custom_call.1} parent=1 // loop_header_branch
      %17 = sbr.rel (%p15) target = $region8
    $region5: #{tpu_custom_call.1} parent=1 // loop_body
      %s19 = ssub.s32 %s14, 1
      %s20 = ssub.s32 %s14, 2
      %s27 = sadd.s32 1, %s22
      %p28 = scmp.ge.s32.totalorder %s27, 1
      %s29 = scalar_select %p28, 0, %s27
      %s30 = sadd.s32 1, %s21
      %s31 = scalar_select %p28, %s30, %s21
      %p32 = scmp.ge.s32.totalorder %s31, 2
      %s33 = scalar_select %p32, 0, %s31
      %s34 = ssub.s32 %s21, %s33
      %p35 = scmp.eq.s32.totalorder %s34, 0
      %s37 = sadd.s32 %s36, 1
      %s38 = scalar_select %p35, %s36, %s37
      %p41 = pneg %p35
      %p42 = scmp.eq.s32.totalorder %s14, 1
      %p43 = por %p41, %p42
      %p44 = scmp.ne.s32.totalorder %s36, %s39
      %p45 = scmp.eq.s32.totalorder %s14, 0
      %p46 = por %p44, %p45
      %p47 = scmp.ne.s32.totalorder %s36, %s39
      %p48 = scmp.eq.s32.totalorder %s19, 1
      %p49 = por %p47, %p48
      %p50 = scmp.ne.s32.totalorder %s39, %s40
      %p51 = scmp.eq.s32.totalorder %s19, 0
      %p52 = por %p50, %p51
      %p53 = scmp.ne.s32.totalorder %s39, %s40
      %p54 = scmp.eq.s32.totalorder %s20, 1
      %p55 = por %p53, %p54
      %p57 = scmp.ne.s32.totalorder %s40, %s56
      %p58 = scmp.eq.s32.totalorder %s20, 0
      %p59 = por %p57, %p58
      %s60 = ssub.s32 %s21, %s33
      %s61 = ssub.s32 %s22, %s29
      %s62 = sor.u32 %s60, %s61
      %p63 = scmp.eq.s32.totalorder %s62, 0
      %s65 = sadd.s32 %s64, 1
      %s66 = scalar_select %p63, %s64, %s65
      %p69 = pneg %p63
      %p70 = scmp.eq.s32.totalorder %s14, 1
      %p71 = por %p69, %p70
      %p72 = scmp.ne.s32.totalorder %s64, %s67
      %p73 = scmp.eq.s32.totalorder %s14, 0
      %p74 = por %p72, %p73
      %p75 = scmp.ne.s32.totalorder %s64, %s67
      %p76 = scmp.eq.s32.totalorder %s19, 1
      %p77 = por %p75, %p76
      %p78 = scmp.ne.s32.totalorder %s67, %s68
      %p79 = scmp.eq.s32.totalorder %s19, 0
      %p80 = por %p78, %p79
      %p81 = scmp.ne.s32.totalorder %s67, %s68
      %p82 = scmp.eq.s32.totalorder %s20, 1
      %p83 = por %p81, %p82
      %p85 = scmp.ne.s32.totalorder %s68, %s84
      %p86 = scmp.eq.s32.totalorder %s20, 0
      %p87 = por %p85, %p86
      %s89 = sadd.s32 %s88, 1
      %p92 = scmp.eq.s32.totalorder %s14, 1
      %p93 = scmp.ne.s32.totalorder %s88, %s90
      %p94 = scmp.eq.s32.totalorder %s14, 0
      %p95 = por %p93, %p94
      %p96 = scmp.ne.s32.totalorder %s88, %s90
      %p97 = scmp.eq.s32.totalorder %s19, 1
      %p98 = por %p96, %p97
      %p99 = scmp.ne.s32.totalorder %s90, %s91
      %p100 = scmp.eq.s32.totalorder %s19, 0
      %p101 = por %p99, %p100
      %p102 = scmp.ne.s32.totalorder %s90, %s91
      %p103 = scmp.eq.s32.totalorder %s20, 1
      %p104 = por %p102, %p103
      %p106 = scmp.ne.s32.totalorder %s91, %s105
      %p107 = scmp.eq.s32.totalorder %s20, 0
      %p108 = por %p106, %p107
      %s110 = sadd.s32 %s109, 1
      %p113 = scmp.eq.s32.totalorder %s14, 1
      %p114 = scmp.ne.s32.totalorder %s109, %s111
      %p115 = scmp.eq.s32.totalorder %s14, 0
      %p116 = por %p114, %p115
      %p117 = scmp.ne.s32.totalorder %s109, %s111
      %p118 = scmp.eq.s32.totalorder %s19, 1
      %p119 = por %p117, %p118
      %p120 = scmp.ne.s32.totalorder %s111, %s112
      %p121 = scmp.eq.s32.totalorder %s19, 0
      %p122 = por %p120, %p121
      %p123 = scmp.ne.s32.totalorder %s111, %s112
      %p124 = scmp.eq.s32.totalorder %s20, 1
      %p125 = por %p123, %p124
      %p127 = scmp.ne.s32.totalorder %s112, %s126
      %p128 = scmp.eq.s32.totalorder %s20, 0
      %p129 = por %p127, %p128
      %s131 = sadd.s32 %s130, 1
      %p134 = scmp.eq.s32.totalorder %s14, 1
      %p135 = scmp.ne.s32.totalorder %s130, %s132
      %p136 = scmp.eq.s32.totalorder %s14, 0
      %p137 = por %p135, %p136
      %p138 = scmp.ne.s32.totalorder %s130, %s132
      %p139 = scmp.eq.s32.totalorder %s19, 1
      %p140 = por %p138, %p139
      %p141 = scmp.ne.s32.totalorder %s132, %s133
      %p142 = scmp.eq.s32.totalorder %s19, 0
      %p143 = por %p141, %p142
      %p144 = scmp.ne.s32.totalorder %s132, %s133
      %p145 = scmp.eq.s32.totalorder %s20, 1
      %p146 = por %p144, %p145
      %p148 = scmp.ne.s32.totalorder %s133, %s147
      %p149 = scmp.eq.s32.totalorder %s20, 0
      %p150 = por %p148, %p149
      %s151 = ssub.s32 %s21, %s33
      %s152 = ssub.s32 %s22, %s29
      %s153 = sor.u32 %s151, %s152
      %p154 = scmp.eq.s32.totalorder %s153, 0
      %s156 = sadd.s32 %s155, 1
      %s157 = scalar_select %p154, %s155, %s156
      %p160 = pneg %p154
      %p161 = scmp.eq.s32.totalorder %s14, 1
      %p162 = por %p160, %p161
      %p163 = scmp.ne.s32.totalorder %s155, %s158
      %p164 = scmp.eq.s32.totalorder %s14, 0
      %p165 = por %p163, %p164
      %p166 = scmp.ne.s32.totalorder %s155, %s158
      %p167 = scmp.eq.s32.totalorder %s19, 1
      %p168 = por %p166, %p167
      %p169 = scmp.ne.s32.totalorder %s158, %s159
      %p170 = scmp.eq.s32.totalorder %s19, 0
      %p171 = por %p169, %p170
      %p172 = scmp.ne.s32.totalorder %s158, %s159
      %p173 = scmp.eq.s32.totalorder %s20, 1
      %p174 = por %p172, %p173
      %p176 = scmp.ne.s32.totalorder %s159, %s175
      %p177 = scmp.eq.s32.totalorder %s20, 0
      %p178 = por %p176, %p177
      %p179 = scmp.le.s32.totalorder 1, %s14
      %p180 = scmp.lt.s32.totalorder %s14, 3
      %p181 = pnand %p179, %p180
      %p182 = pneg %p181
      // Predicated region
      $region9: #{tpu_custom_call.1} parent=5 // pred_check
        _
      $region10: #{tpu_custom_call.1} parent=5 // pred_check_branch
        %184 = sbr.rel (%p181) target = $region12
      $region11: #{tpu_custom_call.1} parent=5 // pred_region
        %s185 = ssub.s32 %s14, 1
        // Predicated region
        $region13: #{tpu_custom_call.1} parent=11 // pred_check
          %p186 = pneg %p101
        $region14: #{tpu_custom_call.1} parent=11 // pred_check_branch
          %188 = sbr.rel (%p186) target = $region16
        $region15: #{tpu_custom_call.1} parent=11 // pred_region
          _
        $region16: #{tpu_custom_call.1} parent=11 // pred_fallthru
          _
        // Predicated region
        $region17: #{tpu_custom_call.1} parent=11 // pred_check
          %p189 = pneg %p122
        $region18: #{tpu_custom_call.1} parent=11 // pred_check_branch
          %191 = sbr.rel (%p189) target = $region20
        $region19: #{tpu_custom_call.1} parent=11 // pred_region
          _
        $region20: #{tpu_custom_call.1} parent=11 // pred_fallthru
          _
        // Predicated region
        $region21: #{tpu_custom_call.1} parent=11 // pred_check
          %p192 = pneg %p143
        $region22: #{tpu_custom_call.1} parent=11 // pred_check_branch
          %194 = sbr.rel (%p192) target = $region24
        $region23: #{tpu_custom_call.1} parent=11 // pred_region
          _
        $region24: #{tpu_custom_call.1} parent=11 // pred_fallthru
          _
      $region12: #{tpu_custom_call.1} parent=5 // pred_fallthru
        _
      %p195 = scmp.lt.s32.totalorder %s14, 2
      // Predicated region
      $region25: #{tpu_custom_call.1} parent=5 // pred_check
        %p196 = pneg %p195
      $region26: #{tpu_custom_call.1} parent=5 // pred_check_branch
        %198 = sbr.rel (%p196) target = $region28
      $region27: #{tpu_custom_call.1} parent=5 // pred_region
        // Predicated region
        $region29: #{tpu_custom_call.1} parent=27 // pred_check
          %p199 = pneg %p46
        $region30: #{tpu_custom_call.1} parent=27 // pred_check_branch
          %201 = sbr.rel (%p199) target = $region32
        $region31: #{tpu_custom_call.1} parent=27 // pred_region
          %p202 = scmp.lt.s32.totalorder %s21, 1
          %s203 = scalar_select %p202, %s21, 1
          %s204 = smul.addr %s203, 2
          %s205 = smul.addr %s204, 8
          %s206 = scalar_lea.vmem %s0, %s205
        $region32: #{tpu_custom_call.1} parent=27 // pred_fallthru
          _
        // Predicated region
        $region33: #{tpu_custom_call.1} parent=27 // pred_check
          %p207 = pneg %p74
        $region34: #{tpu_custom_call.1} parent=27 // pred_check_branch
          %209 = sbr.rel (%p207) target = $region36
        $region35: #{tpu_custom_call.1} parent=27 // pred_region
          %s210 = sand.u32 %s64, 1
          %s211 = sand.u32 %s64, 1
          %s212 = smul.addr %s211, 32
          %s213 = scalar_lea.vmem [#allocation2], %s212
          %s214 = smul.u32 2, %s22
          %s215 = smul.addr %s21, 2
          %s216 = sadd.s32 %s214, %s215
          %s217 = smul.addr %s216, 8
          %s218 = scalar_lea.vmem %s1, %s217
          // Predicated region
          $region37: #{tpu_custom_call.1} parent=35 // pred_check
            _
          $region38: #{tpu_custom_call.1} parent=35 // pred_check_branch
            %220 = sbr.rel (0) target = $region40
          $region39: #{tpu_custom_call.1} parent=35 // pred_region
            // Predicated region
            $region41: #{tpu_custom_call.1} parent=39 // pred_check
              _
            $region42: #{tpu_custom_call.1} parent=39 // pred_check_branch
              %222 = sbr.rel (0) target = $region44
            $region43: #{tpu_custom_call.1} parent=39 // pred_region
              // Predicated region
              $region56: #{tpu_custom_call.1} parent=43 // pred_check
                _
              $region57: #{tpu_custom_call.1} parent=43 // pred_check_branch
                %243 = sbr.rel (0) target = $region59
              $region58: #{tpu_custom_call.1} parent=43 // pred_region
                loop: start=0, step=1, limit=1
                $region60: #{tpu_custom_call.1} parent=58 // loop_pre_header
                  _
                $region61: #{tpu_custom_call.1} parent=58 // loop_header
                  %s245 = sphi 0, %s249
                  %p246 = scmp.ge.s32.totalorder %s245, 1
                  %s250 = sphi %s218, %s218
                  %s251 = sphi %s213, %s213
                $region62: #{tpu_custom_call.1} parent=58 // loop_header_branch
                  %248 = sbr.rel (%p246) target = $region66
                $region63: #{tpu_custom_call.1} parent=58 // loop_body
                  %v252 = vld [vmem:[%s250] sm:$0xff]
                  %253 = vst [vmem:[%s251] sm:$0xff] %v252
                  %v254 = vld [vmem:[%s250 + $0x8] sm:$0xff]
                  %255 = vst [vmem:[%s251 + $0x8] sm:$0xff] %v254
                  %v256 = vld [vmem:[%s250 + $0x20] sm:$0xff]
                  %257 = vst [vmem:[%s251 + $0x10] sm:$0xff] %v256
                  %v258 = vld [vmem:[%s250 + $0x28] sm:$0xff]
                  %259 = vst [vmem:[%s251 + $0x18] sm:$0xff] %v258
                $region64: #{tpu_custom_call.1} parent=58 // loop_footer
                  %s249 = sadd.s32 1, %s245
                $region65: #{tpu_custom_call.1} parent=58 // loop_footer_branch
                  %244 = sbr.rel target = $region61
                $region66: #{tpu_custom_call.1} parent=58 // loop_exit
                  _
              $region59: #{tpu_custom_call.1} parent=43 // pred_fallthru
                _
              // Predicated region
              $region67: #{tpu_custom_call.1} parent=43 // pred_check
                _
              $region68: #{tpu_custom_call.1} parent=43 // pred_check_branch
                %261 = sbr.rel target = $region70
              $region69: #{tpu_custom_call.1} parent=43 // pred_region
                _
              $region70: #{tpu_custom_call.1} parent=43 // pred_fallthru
                _
            $region44: #{tpu_custom_call.1} parent=39 // pred_fallthru
              _
            // Predicated region
            $region45: #{tpu_custom_call.1} parent=39 // pred_check
              _
            $region46: #{tpu_custom_call.1} parent=39 // pred_check_branch
              %224 = sbr.rel target = $region48
            $region47: #{tpu_custom_call.1} parent=39 // pred_region
              loop: start=0, step=1, limit=1
              $region49: #{tpu_custom_call.1} parent=47 // loop_pre_header
                _
              $region50: #{tpu_custom_call.1} parent=47 // loop_header
                %s227 = sphi 0, %s231
                %p228 = scmp.ge.s32.totalorder %s227, 1
                %s232 = sphi %s218, %s218
                %s233 = sphi %s213, %s213
              $region51: #{tpu_custom_call.1} parent=47 // loop_header_branch
                %230 = sbr.rel (%p228) target = $region55
              $region52: #{tpu_custom_call.1} parent=47 // loop_body
                %v234 = vld [vmem:[%s232] sm:$0xff]
                %235 = vst [vmem:[%s233] sm:$0xff] %v234
                %v236 = vld [vmem:[%s232 + $0x8] sm:$0xff]
                %237 = vst [vmem:[%s233 + $0x8] sm:$0xff] %v236
                %v238 = vld [vmem:[%s232 + $0x20] sm:$0xff]
                %239 = vst [vmem:[%s233 + $0x10] sm:$0xff] %v238
                %v240 = vld [vmem:[%s232 + $0x28] sm:$0xff]
                %241 = vst [vmem:[%s233 + $0x18] sm:$0xff] %v240
              $region53: #{tpu_custom_call.1} parent=47 // loop_footer
                %s231 = sadd.s32 1, %s227
              $region54: #{tpu_custom_call.1} parent=47 // loop_footer_branch
                %226 = sbr.rel target = $region50
              $region55: #{tpu_custom_call.1} parent=47 // loop_exit
                _
            $region48: #{tpu_custom_call.1} parent=39 // pred_fallthru
              _
          $region40: #{tpu_custom_call.1} parent=35 // pred_fallthru
            _
          %262 = vnop
        $region36: #{tpu_custom_call.1} parent=27 // pred_fallthru
          _
      $region28: #{tpu_custom_call.1} parent=5 // pred_fallthru
        _
      %p263 = scmp.le.s32.totalorder 1, %s14
      %p264 = scmp.lt.s32.totalorder %s14, 3
      %p265 = pnand %p263, %p264
      %p266 = pneg %p265
      // Predicated region
      $region71: #{tpu_custom_call.1} parent=5 // pred_check
        _
      $region72: #{tpu_custom_call.1} parent=5 // pred_check_branch
        %268 = sbr.rel (%p265) target = $region74
      $region73: #{tpu_custom_call.1} parent=5 // pred_region
        %s269 = ssub.s32 %s14, 1
        %s270 = sand.u32 %s67, 1
        %s271 = sand.u32 %s67, 1
        %s272 = smul.addr %s271, 32
        %s273 = scalar_lea.vmem [#allocation2], %s272
        // Predicated region
        $region75: #{tpu_custom_call.1} parent=73 // pred_check
          %p274 = pneg %p80
        $region76: #{tpu_custom_call.1} parent=73 // pred_check_branch
          %276 = sbr.rel (%p274) target = $region78
        $region77: #{tpu_custom_call.1} parent=73 // pred_region
          _
        $region78: #{tpu_custom_call.1} parent=73 // pred_fallthru
          _
        %p277 = scmp.lt.s32.totalorder %s23, 1
        %s278 = scalar_select %p277, %s23, 1
        %s279 = smul.addr %s278, 2
        %s280 = smul.addr %s279, 8
        %s281 = scalar_lea.vmem %s0, %s280
        %p282 = pneg %p52
        %p283 = pneg %p49
        %s284 = sand.u32 %s67, 1
        %s285 = sand.u32 %s67, 1
        %s286 = smul.addr %s285, 32
        %s287 = scalar_lea.vmem [#allocation2], %s286
        %p288 = pneg %p80
        %p289 = pneg %p77
        %p290 = pneg %p101
        %p291 = pneg %p98
        %p292 = pneg %p122
        %p293 = pneg %p119
        %p294 = pneg %p143
        %p295 = pneg %p140
        %p296 = pneg %p171
        %p297 = pneg %p168
        %s298 = sand.u32 %s158, 1
        %s299 = scalar_lea.sflag [#allocation4], %s298
        %s300 = sand.u32 %s158, 1
        %s301 = smul.addr %s300, 16
        %s302 = scalar_lea.vmem [#allocation3], %s301
        %p303 = scmp.lt.s32.totalorder %s23, 1
        %s304 = scalar_select %p303, %s23, 1
        %s305 = smul.addr %s304, 2
        %s306 = smul.addr %s305, 8
        %s307 = scalar_lea.vmem %s0, %s306
        %s308 = smul.u32 2, %s24
        %s309 = smul.u32 2, %s24
        %v310 = vld [vmem:[%s307] sm:$0xff]
        %v311 = vld [vmem:[%s307 + $0x8] sm:$0xff]
        %v312 = vld [vmem:[%s2] sm:$0xf]
        %vm313 = vcmask 31744
        %v315 = vsel %vm313, %v310, 0
        %v318 = vsel %vm313, %v311, 0
        %vm320 = vcmask 1043456
        %v322 = vsel %vm320, %v312, 0
        %324 = vmatprep.subr.mxu0 0.0
        %325 = vmatpush1.msra.mxu0 %v322
        %326 = vmatprep.subr.mxu0 0.0
        %327 = vmatpush1.msra.mxu0 0.0
        %328 = vmatprep.subr.mxu0 0.0
        %329 = vmatpush1.msra.mxu0 0.0
        %330 = vmatprep.subr.mxu0 0.0
        %331 = vmatpush1.msra.mxu0 0.0
        %332 = vmatprep.subr.mxu0 0.0
        %333 = vmatpush1.msra.mxu0 0.0
        %334 = vmatprep.subr.mxu0 0.0
        %335 = vmatpush1.msra.mxu0 0.0
        %336 = vmatprep.subr.mxu0 0.0
        %337 = vmatpush1.msra.mxu0 0.0
        %338 = vmatprep.subr.mxu0 0.0
        %339 = vmatpush1.msra.mxu0 0.0
        %340 = vmatprep.subr.mxu0 0.0
        %341 = vmatpush1.msra.mxu0 0.0
        %342 = vmatprep.subr.mxu0 0.0
        %343 = vmatpush1.msra.mxu0 0.0
        %344 = vmatprep.subr.mxu0 0.0
        %345 = vmatpush1.msra.mxu0 0.0
        %346 = vmatprep.subr.mxu0 0.0
        %347 = vmatpush1.msra.mxu0 0.0
        %348 = vmatprep.subr.mxu0 0.0
        %349 = vmatpush1.msra.mxu0 0.0
        %350 = vmatprep.subr.mxu0 0.0
        %351 = vmatpush1.msra.mxu0 0.0
        %352 = vmatprep.subr.mxu0 0.0
        %353 = vmatpush1.msra.mxu0 0.0
        %354 = vmatprep.subr.mxu0 0.0
        %355 = vmatpush1.msra.mxu0 0.0
        %356 = vmatprep.subr.mxu0 0.0
        %357 = vmatpush1.msra.mxu0 0.0
        %358 = vmatprep.subr.mxu0 0.0
        %359 = vmatpush1.msra.mxu0 0.0
        %360 = vmatprep.subr.mxu0 0.0
        %361 = vmatpush1.msra.mxu0 0.0
        %362 = vmatprep.subr.mxu0 0.0
        %363 = vmatpush1.msra.mxu0 0.0
        %364 = vmatprep.subr.mxu0 0.0
        %365 = vmatpush1.msra.mxu0 0.0
        %366 = vmatprep.subr.mxu0 0.0
        %367 = vmatpush1.msra.mxu0 0.0
        %368 = vmatprep.subr.mxu0 0.0
        %369 = vmatpush1.msra.mxu0 0.0
        %370 = vmatprep.subr.mxu0 0.0
        %371 = vmatpush1.msra.mxu0 0.0
        %372 = vmatprep.subr.mxu0 0.0
        %373 = vmatpush1.msra.mxu0 0.0
        %374 = vmatprep.subr.mxu0 0.0
        %375 = vmatpush1.msra.mxu0 0.0
        %376 = vmatprep.subr.mxu0 0.0
        %377 = vmatpush1.msra.mxu0 0.0
        %378 = vmatprep.subr.mxu0 0.0
        %379 = vmatpush1.msra.mxu0 0.0
        %380 = vmatprep.subr.mxu0 0.0
        %381 = vmatpush1.msra.mxu0 0.0
        %382 = vmatprep.subr.mxu0 0.0
        %383 = vmatpush1.msra.mxu0 0.0
        %384 = vmatprep.subr.mxu0 0.0
        %385 = vmatpush1.msra.mxu0 0.0
        %386 = vmatprep.subr.mxu0 0.0
        %387 = vmatpush1.msra.mxu0 0.0
        %388 = vmatprep.mubr.f32.mxu0 0.0
        %389 = vmatmul.mubr.f32.gmra.mrb[0].mxu0 %v315
        %v390 = vpop.f32.mrb[0].mxu0
        %v391 = vadd.f32 0.0, %v390
        %v392 = vpop.f32.mrb[0].mxu0
        %393 = vmatprep.mubr.f32.mxu0 0.0
        %394 = vmatmul.mubr.f32.gmra.mrb[0].mxu0 %v318
        %v395 = vpop.f32.mrb[0].mxu0
        %v396 = vadd.f32 0.0, %v395
        %v397 = vpop.f32.mrb[0].mxu0
        %398 = vdwg.mxu0
        %v399 = vld [vmem:[%s3] sm:$0xf]
        %v401 = vsel %vm320, %v399, 0
        %403 = vmatprep.subr.mxu0 0.0
        %404 = vmatpush1.msra.mxu0 %v401
        %405 = vmatprep.subr.mxu0 0.0
        %406 = vmatpush1.msra.mxu0 0.0
        %407 = vmatprep.subr.mxu0 0.0
        %408 = vmatpush1.msra.mxu0 0.0
        %409 = vmatprep.subr.mxu0 0.0
        %410 = vmatpush1.msra.mxu0 0.0
        %411 = vmatprep.subr.mxu0 0.0
        %412 = vmatpush1.msra.mxu0 0.0
        %413 = vmatprep.subr.mxu0 0.0
        %414 = vmatpush1.msra.mxu0 0.0
        %415 = vmatprep.subr.mxu0 0.0
        %416 = vmatpush1.msra.mxu0 0.0
        %417 = vmatprep.subr.mxu0 0.0
        %418 = vmatpush1.msra.mxu0 0.0
        %419 = vmatprep.subr.mxu0 0.0
        %420 = vmatpush1.msra.mxu0 0.0
        %421 = vmatprep.subr.mxu0 0.0
        %422 = vmatpush1.msra.mxu0 0.0
        %423 = vmatprep.subr.mxu0 0.0
        %424 = vmatpush1.msra.mxu0 0.0
        %425 = vmatprep.subr.mxu0 0.0
        %426 = vmatpush1.msra.mxu0 0.0
        %427 = vmatprep.subr.mxu0 0.0
        %428 = vmatpush1.msra.mxu0 0.0
        %429 = vmatprep.subr.mxu0 0.0
        %430 = vmatpush1.msra.mxu0 0.0
        %431 = vmatprep.subr.mxu0 0.0
        %432 = vmatpush1.msra.mxu0 0.0
        %433 = vmatprep.subr.mxu0 0.0
        %434 = vmatpush1.msra.mxu0 0.0
        %435 = vmatprep.subr.mxu0 0.0
        %436 = vmatpush1.msra.mxu0 0.0
        %437 = vmatprep.subr.mxu0 0.0
        %438 = vmatpush1.msra.mxu0 0.0
        %439 = vmatprep.subr.mxu0 0.0
        %440 = vmatpush1.msra.mxu0 0.0
        %441 = vmatprep.subr.mxu0 0.0
        %442 = vmatpush1.msra.mxu0 0.0
        %443 = vmatprep.subr.mxu0 0.0
        %444 = vmatpush1.msra.mxu0 0.0
        %445 = vmatprep.subr.mxu0 0.0
        %446 = vmatpush1.msra.mxu0 0.0
        %447 = vmatprep.subr.mxu0 0.0
        %448 = vmatpush1.msra.mxu0 0.0
        %449 = vmatprep.subr.mxu0 0.0
        %450 = vmatpush1.msra.mxu0 0.0
        %451 = vmatprep.subr.mxu0 0.0
        %452 = vmatpush1.msra.mxu0 0.0
        %453 = vmatprep.subr.mxu0 0.0
        %454 = vmatpush1.msra.mxu0 0.0
        %455 = vmatprep.subr.mxu0 0.0
        %456 = vmatpush1.msra.mxu0 0.0
        %457 = vmatprep.subr.mxu0 0.0
        %458 = vmatpush1.msra.mxu0 0.0
        %459 = vmatprep.subr.mxu0 0.0
        %460 = vmatpush1.msra.mxu0 0.0
        %461 = vmatprep.subr.mxu0 0.0
        %462 = vmatpush1.msra.mxu0 0.0
        %463 = vmatprep.subr.mxu0 0.0
        %464 = vmatpush1.msra.mxu0 0.0
        %465 = vmatprep.subr.mxu0 0.0
        %466 = vmatpush1.msra.mxu0 0.0
        %467 = vmatprep.mubr.f32.mxu0 0.0
        %468 = vmatmul.mubr.f32.gmra.mrb[0].mxu0 %v315
        %v469 = vpop.f32.mrb[0].mxu0
        %v470 = vadd.f32 0.0, %v469
        %v471 = vpop.f32.mrb[0].mxu0
        %472 = vmatprep.mubr.f32.mxu0 0.0
        %473 = vmatmul.mubr.f32.gmra.mrb[0].mxu0 %v318
        %v474 = vpop.f32.mrb[0].mxu0
        %v475 = vadd.f32 0.0, %v474
        %v476 = vpop.f32.mrb[0].mxu0
        %477 = vdwg.mxu0
        %s478 = scalar_lea.vmem %s273, 16 [#allocation2]
        %v479 = vld [vmem:[%s478] sm:$0xff]
        %v480 = vld [vmem:[%s478 + $0x8] sm:$0xff]
        %v481 = vld [vmem:[%s273] sm:$0xff]
        %v482 = vld [vmem:[%s273 + $0x8] sm:$0xff]
        %v483 = vlaneseq
        %v484 = vand.u32 %v483, 127
        %v485 = vld [vmem:[%s4] sm:$0x1]
        %v487 = vlaneseq
        %v488 = vshrl.u32 %v487, 7
        %v489 = vsub.s32 0, %v488
        %v490 = vrot.slane %v485, %v489
        %492 = vset.pattern.permute.xlu0 0
        %493 = vperm.xlu0 %492, %v479
        %v494 = vpop.permute.xlu0 %493
        %495 = vset.pattern.permute.xlu0 0
        %496 = vperm.xlu0 %495, %v480
        %v497 = vpop.permute.xlu0 %496
        %vm498 = vcmp.eq.s32.totalorder %v494, %v484
        %vm499 = vcmp.eq.s32.totalorder %v497, %v484
        %v500 = vsel %vm498, 1, 0
        %v501 = vsel %vm499, 1, 0
        %v502 = vcvt.s32.f32 %v500
        %v503 = vcvt.s32.f32 %v501
        %504 = vset.pattern.permute.xlu0 0
        %505 = vperm.xlu0 %504, %v481
        %v506 = vpop.permute.xlu0 %505
        %507 = vset.pattern.permute.xlu0 0
        %508 = vperm.xlu0 %507, %v482
        %v509 = vpop.permute.xlu0 %508
        %vm510 = vcmp.eq.s32.totalorder %v506, %v484
        %vm511 = vcmp.eq.s32.totalorder %v509, %v484
        %v512 = vsel %vm510, 1, 0
        %v513 = vsel %vm511, 1, 0
        %v514 = vcvt.s32.f32 %v512
        %v515 = vcvt.s32.f32 %v513
        %vm516 = vcmask 130048
        %v518 = vsel %vm516, %v514, 0
        %v521 = vsel %vm516, %v515, 0
        %523 = vmatprep.subr.mxu0 0.0
        %524 = vmatpush1.msra.mxu0 %v470
        %525 = vmatprep.subr.mxu0 0.0
        %526 = vmatpush1.msra.mxu0 %v475
        %527 = vmatprep.subr.mxu0 0.0
        %528 = vmatpush1.msra.mxu0 0.0
        %529 = vmatprep.subr.mxu0 0.0
        %530 = vmatpush1.msra.mxu0 0.0
        %531 = vmatprep.subr.mxu0 0.0
        %532 = vmatpush1.msra.mxu0 0.0
        %533 = vmatprep.subr.mxu0 0.0
        %534 = vmatpush1.msra.mxu0 0.0
        %535 = vmatprep.subr.mxu0 0.0
        %536 = vmatpush1.msra.mxu0 0.0
        %537 = vmatprep.subr.mxu0 0.0
        %538 = vmatpush1.msra.mxu0 0.0
        %539 = vmatprep.subr.mxu0 0.0
        %540 = vmatpush1.msra.mxu0 0.0
        %541 = vmatprep.subr.mxu0 0.0
        %542 = vmatpush1.msra.mxu0 0.0
        %543 = vmatprep.subr.mxu0 0.0
        %544 = vmatpush1.msra.mxu0 0.0
        %545 = vmatprep.subr.mxu0 0.0
        %546 = vmatpush1.msra.mxu0 0.0
        %547 = vmatprep.subr.mxu0 0.0
        %548 = vmatpush1.msra.mxu0 0.0
        %549 = vmatprep.subr.mxu0 0.0
        %550 = vmatpush1.msra.mxu0 0.0
        %551 = vmatprep.subr.mxu0 0.0
        %552 = vmatpush1.msra.mxu0 0.0
        %553 = vmatprep.subr.mxu0 0.0
        %554 = vmatpush1.msra.mxu0 0.0
        %555 = vmatprep.subr.mxu0 0.0
        %556 = vmatpush1.msra.mxu0 0.0
        %557 = vmatprep.subr.mxu0 0.0
        %558 = vmatpush1.msra.mxu0 0.0
        %559 = vmatprep.subr.mxu0 0.0
        %560 = vmatpush1.msra.mxu0 0.0
        %561 = vmatprep.subr.mxu0 0.0
        %562 = vmatpush1.msra.mxu0 0.0
        %563 = vmatprep.subr.mxu0 0.0
        %564 = vmatpush1.msra.mxu0 0.0
        %565 = vmatprep.subr.mxu0 0.0
        %566 = vmatpush1.msra.mxu0 0.0
        %567 = vmatprep.subr.mxu0 0.0
        %568 = vmatpush1.msra.mxu0 0.0
        %569 = vmatprep.subr.mxu0 0.0
        %570 = vmatpush1.msra.mxu0 0.0
        %571 = vmatprep.subr.mxu0 0.0
        %572 = vmatpush1.msra.mxu0 0.0
        %573 = vmatprep.subr.mxu0 0.0
        %574 = vmatpush1.msra.mxu0 0.0
        %575 = vmatprep.subr.mxu0 0.0
        %576 = vmatpush1.msra.mxu0 0.0
        %577 = vmatprep.subr.mxu0 0.0
        %578 = vmatpush1.msra.mxu0 0.0
        %579 = vmatprep.subr.mxu0 0.0
        %580 = vmatpush1.msra.mxu0 0.0
        %581 = vmatprep.subr.mxu0 0.0
        %582 = vmatpush1.msra.mxu0 0.0
        %583 = vmatprep.subr.mxu0 0.0
        %584 = vmatpush1.msra.mxu0 0.0
        %585 = vmatprep.subr.mxu0 0.0
        %586 = vmatpush1.msra.mxu0 0.0
        %587 = vmatprep.mubr.f32.mxu0 0.0
        %588 = vmatmul.mubr.f32.gmra.mrb[0].mxu0 %v518
        %v589 = vpop.f32.mrb[0].mxu0
        %v590 = vadd.f32 0.0, %v589
        %v591 = vpop.f32.mrb[0].mxu0
        %592 = vmatprep.mubr.f32.mxu0 0.0
        %593 = vmatmul.mubr.f32.gmra.mrb[0].mxu0 %v521
        %v594 = vpop.f32.mrb[0].mxu0
        %v595 = vadd.f32 0.0, %v594
        %v596 = vpop.f32.mrb[0].mxu0
        %597 = vdwg.mxu0
        %v599 = vsel %vm516, %v502, 0
        %v602 = vsel %vm516, %v503, 0
        %604 = vmatprep.subr.mxu0 0.0
        %605 = vmatpush1.msra.mxu0 %v391
        %606 = vmatprep.subr.mxu0 0.0
        %607 = vmatpush1.msra.mxu0 %v396
        %608 = vmatprep.subr.mxu0 0.0
        %609 = vmatpush1.msra.mxu0 0.0
        %610 = vmatprep.subr.mxu0 0.0
        %611 = vmatpush1.msra.mxu0 0.0
        %612 = vmatprep.subr.mxu0 0.0
        %613 = vmatpush1.msra.mxu0 0.0
        %614 = vmatprep.subr.mxu0 0.0
        %615 = vmatpush1.msra.mxu0 0.0
        %616 = vmatprep.subr.mxu0 0.0
        %617 = vmatpush1.msra.mxu0 0.0
        %618 = vmatprep.subr.mxu0 0.0
        %619 = vmatpush1.msra.mxu0 0.0
        %620 = vmatprep.subr.mxu0 0.0
        %621 = vmatpush1.msra.mxu0 0.0
        %622 = vmatprep.subr.mxu0 0.0
        %623 = vmatpush1.msra.mxu0 0.0
        %624 = vmatprep.subr.mxu0 0.0
        %625 = vmatpush1.msra.mxu0 0.0
        %626 = vmatprep.subr.mxu0 0.0
        %627 = vmatpush1.msra.mxu0 0.0
        %628 = vmatprep.subr.mxu0 0.0
        %629 = vmatpush1.msra.mxu0 0.0
        %630 = vmatprep.subr.mxu0 0.0
        %631 = vmatpush1.msra.mxu0 0.0
        %632 = vmatprep.subr.mxu0 0.0
        %633 = vmatpush1.msra.mxu0 0.0
        %634 = vmatprep.subr.mxu0 0.0
        %635 = vmatpush1.msra.mxu0 0.0
        %636 = vmatprep.subr.mxu0 0.0
        %637 = vmatpush1.msra.mxu0 0.0
        %638 = vmatprep.subr.mxu0 0.0
        %639 = vmatpush1.msra.mxu0 0.0
        %640 = vmatprep.subr.mxu0 0.0
        %641 = vmatpush1.msra.mxu0 0.0
        %642 = vmatprep.subr.mxu0 0.0
        %643 = vmatpush1.msra.mxu0 0.0
        %644 = vmatprep.subr.mxu0 0.0
        %645 = vmatpush1.msra.mxu0 0.0
        %646 = vmatprep.subr.mxu0 0.0
        %647 = vmatpush1.msra.mxu0 0.0
        %648 = vmatprep.subr.mxu0 0.0
        %649 = vmatpush1.msra.mxu0 0.0
        %650 = vmatprep.subr.mxu0 0.0
        %651 = vmatpush1.msra.mxu0 0.0
        %652 = vmatprep.subr.mxu0 0.0
        %653 = vmatpush1.msra.mxu0 0.0
        %654 = vmatprep.subr.mxu0 0.0
        %655 = vmatpush1.msra.mxu0 0.0
        %656 = vmatprep.subr.mxu0 0.0
        %657 = vmatpush1.msra.mxu0 0.0
        %658 = vmatprep.subr.mxu0 0.0
        %659 = vmatpush1.msra.mxu0 0.0
        %660 = vmatprep.subr.mxu0 0.0
        %661 = vmatpush1.msra.mxu0 0.0
        %662 = vmatprep.subr.mxu0 0.0
        %663 = vmatpush1.msra.mxu0 0.0
        %664 = vmatprep.subr.mxu0 0.0
        %665 = vmatpush1.msra.mxu0 0.0
        %666 = vmatprep.subr.mxu0 0.0
        %667 = vmatpush1.msra.mxu0 0.0
        %668 = vmatprep.mubr.f32.mxu0 0.0
        %669 = vmatmul.mubr.f32.gmra.mrb[0].mxu0 %v599
        %v670 = vpop.f32.mrb[0].mxu0
        %v671 = vadd.f32 %v590, %v670
        %v672 = vpop.f32.mrb[0].mxu0
        %673 = vmatprep.mubr.f32.mxu0 0.0
        %674 = vmatmul.mubr.f32.gmra.mrb[0].mxu0 %v602
        %v675 = vpop.f32.mrb[0].mxu0
        %v676 = vadd.f32 %v595, %v675
        %v677 = vpop.f32.mrb[0].mxu0
        %678 = vdwg.mxu0
        %v679 = vadd.f32 %v671, %v490
        %v680 = vadd.f32 %v676, %v490
        %v681 = vmax.f32 %v679, 0.0
        %v682 = vmax.f32 %v680, 0.0
        %683 = vset.pattern.permute.xlu0 1
        %684 = vperm.xlu0 %683, %v479
        %v685 = vpop.permute.xlu0 %684
        %686 = vset.pattern.permute.xlu0 1
        %687 = vperm.xlu0 %686, %v480
        %v688 = vpop.permute.xlu0 %687
        %vm689 = vcmp.eq.s32.totalorder %v685, %v484
        %vm690 = vcmp.eq.s32.totalorder %v688, %v484
        %v691 = vsel %vm689, 1, 0
        %v692 = vsel %vm690, 1, 0
        %v693 = vcvt.s32.f32 %v691
        %v694 = vcvt.s32.f32 %v692
        %695 = vset.pattern.permute.xlu0 1
        %696 = vperm.xlu0 %695, %v481
        %v697 = vpop.permute.xlu0 %696
        %698 = vset.pattern.permute.xlu0 1
        %699 = vperm.xlu0 %698, %v482
        %v700 = vpop.permute.xlu0 %699
        %vm701 = vcmp.eq.s32.totalorder %v697, %v484
        %vm702 = vcmp.eq.s32.totalorder %v700, %v484
        %v703 = vsel %vm701, 1, 0
        %v704 = vsel %vm702, 1, 0
        %v705 = vcvt.s32.f32 %v703
        %v706 = vcvt.s32.f32 %v704
        %v708 = vsel %vm516, %v705, 0
        %v711 = vsel %vm516, %v706, 0
        %713 = vmatprep.subr.mxu0 0.0
        %714 = vmatpush1.msra.mxu0 %v470
        %715 = vmatprep.subr.mxu0 0.0
        %716 = vmatpush1.msra.mxu0 %v475
        %717 = vmatprep.subr.mxu0 0.0
        %718 = vmatpush1.msra.mxu0 0.0
        %719 = vmatprep.subr.mxu0 0.0
        %720 = vmatpush1.msra.mxu0 0.0
        %721 = vmatprep.subr.mxu0 0.0
        %722 = vmatpush1.msra.mxu0 0.0
        %723 = vmatprep.subr.mxu0 0.0
        %724 = vmatpush1.msra.mxu0 0.0
        %725 = vmatprep.subr.mxu0 0.0
        %726 = vmatpush1.msra.mxu0 0.0
        %727 = vmatprep.subr.mxu0 0.0
        %728 = vmatpush1.msra.mxu0 0.0
        %729 = vmatprep.subr.mxu0 0.0
        %730 = vmatpush1.msra.mxu0 0.0
        %731 = vmatprep.subr.mxu0 0.0
        %732 = vmatpush1.msra.mxu0 0.0
        %733 = vmatprep.subr.mxu0 0.0
        %734 = vmatpush1.msra.mxu0 0.0
        %735 = vmatprep.subr.mxu0 0.0
        %736 = vmatpush1.msra.mxu0 0.0
        %737 = vmatprep.subr.mxu0 0.0
        %738 = vmatpush1.msra.mxu0 0.0
        %739 = vmatprep.subr.mxu0 0.0
        %740 = vmatpush1.msra.mxu0 0.0
        %741 = vmatprep.subr.mxu0 0.0
        %742 = vmatpush1.msra.mxu0 0.0
        %743 = vmatprep.subr.mxu0 0.0
        %744 = vmatpush1.msra.mxu0 0.0
        %745 = vmatprep.subr.mxu0 0.0
        %746 = vmatpush1.msra.mxu0 0.0
        %747 = vmatprep.subr.mxu0 0.0
        %748 = vmatpush1.msra.mxu0 0.0
        %749 = vmatprep.subr.mxu0 0.0
        %750 = vmatpush1.msra.mxu0 0.0
        %751 = vmatprep.subr.mxu0 0.0
        %752 = vmatpush1.msra.mxu0 0.0
        %753 = vmatprep.subr.mxu0 0.0
        %754 = vmatpush1.msra.mxu0 0.0
        %755 = vmatprep.subr.mxu0 0.0
        %756 = vmatpush1.msra.mxu0 0.0
        %757 = vmatprep.subr.mxu0 0.0
        %758 = vmatpush1.msra.mxu0 0.0
        %759 = vmatprep.subr.mxu0 0.0
        %760 = vmatpush1.msra.mxu0 0.0
        %761 = vmatprep.subr.mxu0 0.0
        %762 = vmatpush1.msra.mxu0 0.0
        %763 = vmatprep.subr.mxu0 0.0
        %764 = vmatpush1.msra.mxu0 0.0
        %765 = vmatprep.subr.mxu0 0.0
        %766 = vmatpush1.msra.mxu0 0.0
        %767 = vmatprep.subr.mxu0 0.0
        %768 = vmatpush1.msra.mxu0 0.0
        %769 = vmatprep.subr.mxu0 0.0
        %770 = vmatpush1.msra.mxu0 0.0
        %771 = vmatprep.subr.mxu0 0.0
        %772 = vmatpush1.msra.mxu0 0.0
        %773 = vmatprep.subr.mxu0 0.0
        %774 = vmatpush1.msra.mxu0 0.0
        %775 = vmatprep.subr.mxu0 0.0
        %776 = vmatpush1.msra.mxu0 0.0
        %777 = vmatprep.mubr.f32.mxu0 0.0
        %778 = vmatmul.mubr.f32.gmra.mrb[0].mxu0 %v708
        %v779 = vpop.f32.mrb[0].mxu0
        %v780 = vadd.f32 0.0, %v779
        %v781 = vpop.f32.mrb[0].mxu0
        %782 = vmatprep.mubr.f32.mxu0 0.0
        %783 = vmatmul.mubr.f32.gmra.mrb[0].mxu0 %v711
        %v784 = vpop.f32.mrb[0].mxu0
        %v785 = vadd.f32 0.0, %v784
        %v786 = vpop.f32.mrb[0].mxu0
        %787 = vdwg.mxu0
        %v789 = vsel %vm516, %v693, 0
        %v792 = vsel %vm516, %v694, 0
        %794 = vmatprep.subr.mxu0 0.0
        %795 = vmatpush1.msra.mxu0 %v391
        %796 = vmatprep.subr.mxu0 0.0
        %797 = vmatpush1.msra.mxu0 %v396
        %798 = vmatprep.subr.mxu0 0.0
        %799 = vmatpush1.msra.mxu0 0.0
        %800 = vmatprep.subr.mxu0 0.0
        %801 = vmatpush1.msra.mxu0 0.0
        %802 = vmatprep.subr.mxu0 0.0
        %803 = vmatpush1.msra.mxu0 0.0
        %804 = vmatprep.subr.mxu0 0.0
        %805 = vmatpush1.msra.mxu0 0.0
        %806 = vmatprep.subr.mxu0 0.0
        %807 = vmatpush1.msra.mxu0 0.0
        %808 = vmatprep.subr.mxu0 0.0
        %809 = vmatpush1.msra.mxu0 0.0
        %810 = vmatprep.subr.mxu0 0.0
        %811 = vmatpush1.msra.mxu0 0.0
        %812 = vmatprep.subr.mxu0 0.0
        %813 = vmatpush1.msra.mxu0 0.0
        %814 = vmatprep.subr.mxu0 0.0
        %815 = vmatpush1.msra.mxu0 0.0
        %816 = vmatprep.subr.mxu0 0.0
        %817 = vmatpush1.msra.mxu0 0.0
        %818 = vmatprep.subr.mxu0 0.0
        %819 = vmatpush1.msra.mxu0 0.0
        %820 = vmatprep.subr.mxu0 0.0
        %821 = vmatpush1.msra.mxu0 0.0
        %822 = vmatprep.subr.mxu0 0.0
        %823 = vmatpush1.msra.mxu0 0.0
        %824 = vmatprep.subr.mxu0 0.0
        %825 = vmatpush1.msra.mxu0 0.0
        %826 = vmatprep.subr.mxu0 0.0
        %827 = vmatpush1.msra.mxu0 0.0
        %828 = vmatprep.subr.mxu0 0.0
        %829 = vmatpush1.msra.mxu0 0.0
        %830 = vmatprep.subr.mxu0 0.0
        %831 = vmatpush1.msra.mxu0 0.0
        %832 = vmatprep.subr.mxu0 0.0
        %833 = vmatpush1.msra.mxu0 0.0
        %834 = vmatprep.subr.mxu0 0.0
        %835 = vmatpush1.msra.mxu0 0.0
        %836 = vmatprep.subr.mxu0 0.0
        %837 = vmatpush1.msra.mxu0 0.0
        %838 = vmatprep.subr.mxu0 0.0
        %839 = vmatpush1.msra.mxu0 0.0
        %840 = vmatprep.subr.mxu0 0.0
        %841 = vmatpush1.msra.mxu0 0.0
        %842 = vmatprep.subr.mxu0 0.0
        %843 = vmatpush1.msra.mxu0 0.0
        %844 = vmatprep.subr.mxu0 0.0
        %845 = vmatpush1.msra.mxu0 0.0
        %846 = vmatprep.subr.mxu0 0.0
        %847 = vmatpush1.msra.mxu0 0.0
        %848 = vmatprep.subr.mxu0 0.0
        %849 = vmatpush1.msra.mxu0 0.0
        %850 = vmatprep.subr.mxu0 0.0
        %851 = vmatpush1.msra.mxu0 0.0
        %852 = vmatprep.subr.mxu0 0.0
        %853 = vmatpush1.msra.mxu0 0.0
        %854 = vmatprep.subr.mxu0 0.0
        %855 = vmatpush1.msra.mxu0 0.0
        %856 = vmatprep.subr.mxu0 0.0
        %857 = vmatpush1.msra.mxu0 0.0
        %858 = vmatprep.mubr.f32.mxu0 0.0
        %859 = vmatmul.mubr.f32.gmra.mrb[0].mxu0 %v789
        %v860 = vpop.f32.mrb[0].mxu0
        %v861 = vadd.f32 %v780, %v860
        %v862 = vpop.f32.mrb[0].mxu0
        %863 = vmatprep.mubr.f32.mxu0 0.0
        %864 = vmatmul.mubr.f32.gmra.mrb[0].mxu0 %v792
        %v865 = vpop.f32.mrb[0].mxu0
        %v866 = vadd.f32 %v785, %v865
        %v867 = vpop.f32.mrb[0].mxu0
        %868 = vdwg.mxu0
        %v869 = vadd.f32 %v861, %v490
        %v870 = vadd.f32 %v866, %v490
        %v871 = vmax.f32 %v869, 0.0
        %v872 = vmax.f32 %v870, 0.0
        %v873 = vmax.f32 %v681, %v871
        %v874 = vmax.f32 %v682, %v872
        %875 = vset.pattern.permute.xlu0 2
        %876 = vperm.xlu0 %875, %v479
        %v877 = vpop.permute.xlu0 %876
        %878 = vset.pattern.permute.xlu0 2
        %879 = vperm.xlu0 %878, %v480
        %v880 = vpop.permute.xlu0 %879
        %vm881 = vcmp.eq.s32.totalorder %v877, %v484
        %vm882 = vcmp.eq.s32.totalorder %v880, %v484
        %v883 = vsel %vm881, 1, 0
        %v884 = vsel %vm882, 1, 0
        %v885 = vcvt.s32.f32 %v883
        %v886 = vcvt.s32.f32 %v884
        %887 = vset.pattern.permute.xlu0 2
        %888 = vperm.xlu0 %887, %v481
        %v889 = vpop.permute.xlu0 %888
        %890 = vset.pattern.permute.xlu0 2
        %891 = vperm.xlu0 %890, %v482
        %v892 = vpop.permute.xlu0 %891
        %vm893 = vcmp.eq.s32.totalorder %v889, %v484
        %vm894 = vcmp.eq.s32.totalorder %v892, %v484
        %v895 = vsel %vm893, 1, 0
        %v896 = vsel %vm894, 1, 0
        %v897 = vcvt.s32.f32 %v895
        %v898 = vcvt.s32.f32 %v896
        %v900 = vsel %vm516, %v897, 0
        %v903 = vsel %vm516, %v898, 0
        %905 = vmatprep.subr.mxu0 0.0
        %906 = vmatpush1.msra.mxu0 %v470
        %907 = vmatprep.subr.mxu0 0.0
        %908 = vmatpush1.msra.mxu0 %v475
        %909 = vmatprep.subr.mxu0 0.0
        %910 = vmatpush1.msra.mxu0 0.0
        %911 = vmatprep.subr.mxu0 0.0
        %912 = vmatpush1.msra.mxu0 0.0
        %913 = vmatprep.subr.mxu0 0.0
        %914 = vmatpush1.msra.mxu0 0.0
        %915 = vmatprep.subr.mxu0 0.0
        %916 = vmatpush1.msra.mxu0 0.0
        %917 = vmatprep.subr.mxu0 0.0
        %918 = vmatpush1.msra.mxu0 0.0
        %919 = vmatprep.subr.mxu0 0.0
        %920 = vmatpush1.msra.mxu0 0.0
        %921 = vmatprep.subr.mxu0 0.0
        %922 = vmatpush1.msra.mxu0 0.0
        %923 = vmatprep.subr.mxu0 0.0
        %924 = vmatpush1.msra.mxu0 0.0
        %925 = vmatprep.subr.mxu0 0.0
        %926 = vmatpush1.msra.mxu0 0.0
        %927 = vmatprep.subr.mxu0 0.0
        %928 = vmatpush1.msra.mxu0 0.0
        %929 = vmatprep.subr.mxu0 0.0
        %930 = vmatpush1.msra.mxu0 0.0
        %931 = vmatprep.subr.mxu0 0.0
        %932 = vmatpush1.msra.mxu0 0.0
        %933 = vmatprep.subr.mxu0 0.0
        %934 = vmatpush1.msra.mxu0 0.0
        %935 = vmatprep.subr.mxu0 0.0
        %936 = vmatpush1.msra.mxu0 0.0
        %937 = vmatprep.subr.mxu0 0.0
        %938 = vmatpush1.msra.mxu0 0.0
        %939 = vmatprep.subr.mxu0 0.0
        %940 = vmatpush1.msra.mxu0 0.0
        %941 = vmatprep.subr.mxu0 0.0
        %942 = vmatpush1.msra.mxu0 0.0
        %943 = vmatprep.subr.mxu0 0.0
        %944 = vmatpush1.msra.mxu0 0.0
        %945 = vmatprep.subr.mxu0 0.0
        %946 = vmatpush1.msra.mxu0 0.0
        %947 = vmatprep.subr.mxu0 0.0
        %948 = vmatpush1.msra.mxu0 0.0
        %949 = vmatprep.subr.mxu0 0.0
        %950 = vmatpush1.msra.mxu0 0.0
        %951 = vmatprep.subr.mxu0 0.0
        %952 = vmatpush1.msra.mxu0 0.0
        %953 = vmatprep.subr.mxu0 0.0
        %954 = vmatpush1.msra.mxu0 0.0
        %955 = vmatprep.subr.mxu0 0.0
        %956 = vmatpush1.msra.mxu0 0.0
        %957 = vmatprep.subr.mxu0 0.0
        %958 = vmatpush1.msra.mxu0 0.0
        %959 = vmatprep.subr.mxu0 0.0
        %960 = vmatpush1.msra.mxu0 0.0
        %961 = vmatprep.subr.mxu0 0.0
        %962 = vmatpush1.msra.mxu0 0.0
        %963 = vmatprep.subr.mxu0 0.0
        %964 = vmatpush1.msra.mxu0 0.0
        %965 = vmatprep.subr.mxu0 0.0
        %966 = vmatpush1.msra.mxu0 0.0
        %967 = vmatprep.subr.mxu0 0.0
        %968 = vmatpush1.msra.mxu0 0.0
        %969 = vmatprep.mubr.f32.mxu0 0.0
        %970 = vmatmul.mubr.f32.gmra.mrb[0].mxu0 %v900
        %v971 = vpop.f32.mrb[0].mxu0
        %v972 = vadd.f32 0.0, %v971
        %v973 = vpop.f32.mrb[0].mxu0
        %974 = vmatprep.mubr.f32.mxu0 0.0
        %975 = vmatmul.mubr.f32.gmra.mrb[0].mxu0 %v903
        %v976 = vpop.f32.mrb[0].mxu0
        %v977 = vadd.f32 0.0, %v976
        %v978 = vpop.f32.mrb[0].mxu0
        %979 = vdwg.mxu0
        %v981 = vsel %vm516, %v885, 0
        %v984 = vsel %vm516, %v886, 0
        %986 = vmatprep.subr.mxu0 0.0
        %987 = vmatpush1.msra.mxu0 %v391
        %988 = vmatprep.subr.mxu0 0.0
        %989 = vmatpush1.msra.mxu0 %v396
        %990 = vmatprep.subr.mxu0 0.0
        %991 = vmatpush1.msra.mxu0 0.0
        %992 = vmatprep.subr.mxu0 0.0
        %993 = vmatpush1.msra.mxu0 0.0
        %994 = vmatprep.subr.mxu0 0.0
        %995 = vmatpush1.msra.mxu0 0.0
        %996 = vmatprep.subr.mxu0 0.0
        %997 = vmatpush1.msra.mxu0 0.0
        %998 = vmatprep.subr.mxu0 0.0
        %999 = vmatpush1.msra.mxu0 0.0
        %1000 = vmatprep.subr.mxu0 0.0
        %1001 = vmatpush1.msra.mxu0 0.0
        %1002 = vmatprep.subr.mxu0 0.0
        %1003 = vmatpush1.msra.mxu0 0.0
        %1004 = vmatprep.subr.mxu0 0.0
        %1005 = vmatpush1.msra.mxu0 0.0
        %1006 = vmatprep.subr.mxu0 0.0
        %1007 = vmatpush1.msra.mxu0 0.0
        %1008 = vmatprep.subr.mxu0 0.0
        %1009 = vmatpush1.msra.mxu0 0.0
        %1010 = vmatprep.subr.mxu0 0.0
        %1011 = vmatpush1.msra.mxu0 0.0
        %1012 = vmatprep.subr.mxu0 0.0
        %1013 = vmatpush1.msra.mxu0 0.0
        %1014 = vmatprep.subr.mxu0 0.0
        %1015 = vmatpush1.msra.mxu0 0.0
        %1016 = vmatprep.subr.mxu0 0.0
        %1017 = vmatpush1.msra.mxu0 0.0
        %1018 = vmatprep.subr.mxu0 0.0
        %1019 = vmatpush1.msra.mxu0 0.0
        %1020 = vmatprep.subr.mxu0 0.0
        %1021 = vmatpush1.msra.mxu0 0.0
        %1022 = vmatprep.subr.mxu0 0.0
        %1023 = vmatpush1.msra.mxu0 0.0
        %1024 = vmatprep.subr.mxu0 0.0
        %1025 = vmatpush1.msra.mxu0 0.0
        %1026 = vmatprep.subr.mxu0 0.0
        %1027 = vmatpush1.msra.mxu0 0.0
        %1028 = vmatprep.subr.mxu0 0.0
        %1029 = vmatpush1.msra.mxu0 0.0
        %1030 = vmatprep.subr.mxu0 0.0
        %1031 = vmatpush1.msra.mxu0 0.0
        %1032 = vmatprep.subr.mxu0 0.0
        %1033 = vmatpush1.msra.mxu0 0.0
        %1034 = vmatprep.subr.mxu0 0.0
        %1035 = vmatpush1.msra.mxu0 0.0
        %1036 = vmatprep.subr.mxu0 0.0
        %1037 = vmatpush1.msra.mxu0 0.0
        %1038 = vmatprep.subr.mxu0 0.0
        %1039 = vmatpush1.msra.mxu0 0.0
        %1040 = vmatprep.subr.mxu0 0.0
        %1041 = vmatpush1.msra.mxu0 0.0
        %1042 = vmatprep.subr.mxu0 0.0
        %1043 = vmatpush1.msra.mxu0 0.0
        %1044 = vmatprep.subr.mxu0 0.0
        %1045 = vmatpush1.msra.mxu0 0.0
        %1046 = vmatprep.subr.mxu0 0.0
        %1047 = vmatpush1.msra.mxu0 0.0
        %1048 = vmatprep.subr.mxu0 0.0
        %1049 = vmatpush1.msra.mxu0 0.0
        %1050 = vmatprep.mubr.f32.mxu0 0.0
        %1051 = vmatmul.mubr.f32.gmra.mrb[0].mxu0 %v981
        %v1052 = vpop.f32.mrb[0].mxu0
        %v1053 = vadd.f32 %v972, %v1052
        %v1054 = vpop.f32.mrb[0].mxu0
        %1055 = vmatprep.mubr.f32.mxu0 0.0
        %1056 = vmatmul.mubr.f32.gmra.mrb[0].mxu0 %v984
        %v1057 = vpop.f32.mrb[0].mxu0
        %v1058 = vadd.f32 %v977, %v1057
        %v1059 = vpop.f32.mrb[0].mxu0
        %1060 = vdwg.mxu0
        %v1061 = vadd.f32 %v1053, %v490
        %v1062 = vadd.f32 %v1058, %v490
        %v1063 = vmax.f32 %v1061, 0.0
        %v1064 = vmax.f32 %v1062, 0.0
        %v1065 = vmax.f32 %v873, %v1063
        %v1066 = vmax.f32 %v874, %v1064
        %1067 = vset.pattern.permute.xlu0 3
        %1068 = vperm.xlu0 %1067, %v479
        %v1069 = vpop.permute.xlu0 %1068
        %1070 = vset.pattern.permute.xlu0 3
        %1071 = vperm.xlu0 %1070, %v480
        %v1072 = vpop.permute.xlu0 %1071
        %vm1073 = vcmp.eq.s32.totalorder %v1069, %v484
        %vm1074 = vcmp.eq.s32.totalorder %v1072, %v484
        %v1075 = vsel %vm1073, 1, 0
        %v1076 = vsel %vm1074, 1, 0
        %v1077 = vcvt.s32.f32 %v1075
        %v1078 = vcvt.s32.f32 %v1076
        %1079 = vset.pattern.permute.xlu0 3
        %1080 = vperm.xlu0 %1079, %v481
        %v1081 = vpop.permute.xlu0 %1080
        %1082 = vset.pattern.permute.xlu0 3
        %1083 = vperm.xlu0 %1082, %v482
        %v1084 = vpop.permute.xlu0 %1083
        %vm1085 = vcmp.eq.s32.totalorder %v1081, %v484
        %vm1086 = vcmp.eq.s32.totalorder %v1084, %v484
        %v1087 = vsel %vm1085, 1, 0
        %v1088 = vsel %vm1086, 1, 0
        %v1089 = vcvt.s32.f32 %v1087
        %v1090 = vcvt.s32.f32 %v1088
        %v1092 = vsel %vm516, %v1089, 0
        %v1095 = vsel %vm516, %v1090, 0
        %1097 = vmatprep.subr.mxu0 0.0
        %1098 = vmatpush1.msra.mxu0 %v470
        %1099 = vmatprep.subr.mxu0 0.0
        %1100 = vmatpush1.msra.mxu0 %v475
        %1101 = vmatprep.subr.mxu0 0.0
        %1102 = vmatpush1.msra.mxu0 0.0
        %1103 = vmatprep.subr.mxu0 0.0
        %1104 = vmatpush1.msra.mxu0 0.0
        %1105 = vmatprep.subr.mxu0 0.0
        %1106 = vmatpush1.msra.mxu0 0.0
        %1107 = vmatprep.subr.mxu0 0.0
        %1108 = vmatpush1.msra.mxu0 0.0
        %1109 = vmatprep.subr.mxu0 0.0
        %1110 = vmatpush1.msra.mxu0 0.0
        %1111 = vmatprep.subr.mxu0 0.0
        %1112 = vmatpush1.msra.mxu0 0.0
        %1113 = vmatprep.subr.mxu0 0.0
        %1114 = vmatpush1.msra.mxu0 0.0
        %1115 = vmatprep.subr.mxu0 0.0
        %1116 = vmatpush1.msra.mxu0 0.0
        %1117 = vmatprep.subr.mxu0 0.0
        %1118 = vmatpush1.msra.mxu0 0.0
        %1119 = vmatprep.subr.mxu0 0.0
        %1120 = vmatpush1.msra.mxu0 0.0
        %1121 = vmatprep.subr.mxu0 0.0
        %1122 = vmatpush1.msra.mxu0 0.0
        %1123 = vmatprep.subr.mxu0 0.0
        %1124 = vmatpush1.msra.mxu0 0.0
        %1125 = vmatprep.subr.mxu0 0.0
        %1126 = vmatpush1.msra.mxu0 0.0
        %1127 = vmatprep.subr.mxu0 0.0
        %1128 = vmatpush1.msra.mxu0 0.0
        %1129 = vmatprep.subr.mxu0 0.0
        %1130 = vmatpush1.msra.mxu0 0.0
        %1131 = vmatprep.subr.mxu0 0.0
        %1132 = vmatpush1.msra.mxu0 0.0
        %1133 = vmatprep.subr.mxu0 0.0
        %1134 = vmatpush1.msra.mxu0 0.0
        %1135 = vmatprep.subr.mxu0 0.0
        %1136 = vmatpush1.msra.mxu0 0.0
        %1137 = vmatprep.subr.mxu0 0.0
        %1138 = vmatpush1.msra.mxu0 0.0
        %1139 = vmatprep.subr.mxu0 0.0
        %1140 = vmatpush1.msra.mxu0 0.0
        %1141 = vmatprep.subr.mxu0 0.0
        %1142 = vmatpush1.msra.mxu0 0.0
        %1143 = vmatprep.subr.mxu0 0.0
        %1144 = vmatpush1.msra.mxu0 0.0
        %1145 = vmatprep.subr.mxu0 0.0
        %1146 = vmatpush1.msra.mxu0 0.0
        %1147 = vmatprep.subr.mxu0 0.0
        %1148 = vmatpush1.msra.mxu0 0.0
        %1149 = vmatprep.subr.mxu0 0.0
        %1150 = vmatpush1.msra.mxu0 0.0
        %1151 = vmatprep.subr.mxu0 0.0
        %1152 = vmatpush1.msra.mxu0 0.0
        %1153 = vmatprep.subr.mxu0 0.0
        %1154 = vmatpush1.msra.mxu0 0.0
        %1155 = vmatprep.subr.mxu0 0.0
        %1156 = vmatpush1.msra.mxu0 0.0
        %1157 = vmatprep.subr.mxu0 0.0
        %1158 = vmatpush1.msra.mxu0 0.0
        %1159 = vmatprep.subr.mxu0 0.0
        %1160 = vmatpush1.msra.mxu0 0.0
        %1161 = vmatprep.mubr.f32.mxu0 0.0
        %1162 = vmatmul.mubr.f32.gmra.mrb[0].mxu0 %v1092
        %v1163 = vpop.f32.mrb[0].mxu0
        %v1164 = vadd.f32 0.0, %v1163
        %v1165 = vpop.f32.mrb[0].mxu0
        %1166 = vmatprep.mubr.f32.mxu0 0.0
        %1167 = vmatmul.mubr.f32.gmra.mrb[0].mxu0 %v1095
        %v1168 = vpop.f32.mrb[0].mxu0
        %v1169 = vadd.f32 0.0, %v1168
        %v1170 = vpop.f32.mrb[0].mxu0
        %1171 = vdwg.mxu0
        %v1173 = vsel %vm516, %v1077, 0
        %v1176 = vsel %vm516, %v1078, 0
        %1178 = vmatprep.subr.mxu0 0.0
        %1179 = vmatpush1.msra.mxu0 %v391
        %1180 = vmatprep.subr.mxu0 0.0
        %1181 = vmatpush1.msra.mxu0 %v396
        %1182 = vmatprep.subr.mxu0 0.0
        %1183 = vmatpush1.msra.mxu0 0.0
        %1184 = vmatprep.subr.mxu0 0.0
        %1185 = vmatpush1.msra.mxu0 0.0
        %1186 = vmatprep.subr.mxu0 0.0
        %1187 = vmatpush1.msra.mxu0 0.0
        %1188 = vmatprep.subr.mxu0 0.0
        %1189 = vmatpush1.msra.mxu0 0.0
        %1190 = vmatprep.subr.mxu0 0.0
        %1191 = vmatpush1.msra.mxu0 0.0
        %1192 = vmatprep.subr.mxu0 0.0
        %1193 = vmatpush1.msra.mxu0 0.0
        %1194 = vmatprep.subr.mxu0 0.0
        %1195 = vmatpush1.msra.mxu0 0.0
        %1196 = vmatprep.subr.mxu0 0.0
        %1197 = vmatpush1.msra.mxu0 0.0
        %1198 = vmatprep.subr.mxu0 0.0
        %1199 = vmatpush1.msra.mxu0 0.0
        %1200 = vmatprep.subr.mxu0 0.0
        %1201 = vmatpush1.msra.mxu0 0.0
        %1202 = vmatprep.subr.mxu0 0.0
        %1203 = vmatpush1.msra.mxu0 0.0
        %1204 = vmatprep.subr.mxu0 0.0
        %1205 = vmatpush1.msra.mxu0 0.0
        %1206 = vmatprep.subr.mxu0 0.0
        %1207 = vmatpush1.msra.mxu0 0.0
        %1208 = vmatprep.subr.mxu0 0.0
        %1209 = vmatpush1.msra.mxu0 0.0
        %1210 = vmatprep.subr.mxu0 0.0
        %1211 = vmatpush1.msra.mxu0 0.0
        %1212 = vmatprep.subr.mxu0 0.0
        %1213 = vmatpush1.msra.mxu0 0.0
        %1214 = vmatprep.subr.mxu0 0.0
        %1215 = vmatpush1.msra.mxu0 0.0
        %1216 = vmatprep.subr.mxu0 0.0
        %1217 = vmatpush1.msra.mxu0 0.0
        %1218 = vmatprep.subr.mxu0 0.0
        %1219 = vmatpush1.msra.mxu0 0.0
        %1220 = vmatprep.subr.mxu0 0.0
        %1221 = vmatpush1.msra.mxu0 0.0
        %1222 = vmatprep.subr.mxu0 0.0
        %1223 = vmatpush1.msra.mxu0 0.0
        %1224 = vmatprep.subr.mxu0 0.0
        %1225 = vmatpush1.msra.mxu0 0.0
        %1226 = vmatprep.subr.mxu0 0.0
        %1227 = vmatpush1.msra.mxu0 0.0
        %1228 = vmatprep.subr.mxu0 0.0
        %1229 = vmatpush1.msra.mxu0 0.0
        %1230 = vmatprep.subr.mxu0 0.0
        %1231 = vmatpush1.msra.mxu0 0.0
        %1232 = vmatprep.subr.mxu0 0.0
        %1233 = vmatpush1.msra.mxu0 0.0
        %1234 = vmatprep.subr.mxu0 0.0
        %1235 = vmatpush1.msra.mxu0 0.0
        %1236 = vmatprep.subr.mxu0 0.0
        %1237 = vmatpush1.msra.mxu0 0.0
        %1238 = vmatprep.subr.mxu0 0.0
        %1239 = vmatpush1.msra.mxu0 0.0
        %1240 = vmatprep.subr.mxu0 0.0
        %1241 = vmatpush1.msra.mxu0 0.0
        %1242 = vmatprep.mubr.f32.mxu0 0.0
        %1243 = vmatmul.mubr.f32.gmra.mrb[0].mxu0 %v1173
        %v1244 = vpop.f32.mrb[0].mxu0
        %v1245 = vadd.f32 %v1164, %v1244
        %v1246 = vpop.f32.mrb[0].mxu0
        %1247 = vmatprep.mubr.f32.mxu0 0.0
        %1248 = vmatmul.mubr.f32.gmra.mrb[0].mxu0 %v1176
        %v1249 = vpop.f32.mrb[0].mxu0
        %v1250 = vadd.f32 %v1169, %v1249
        %v1251 = vpop.f32.mrb[0].mxu0
        %1252 = vdwg.mxu0
        %v1253 = vadd.f32 %v1245, %v490
        %v1254 = vadd.f32 %v1250, %v490
        %v1255 = vmax.f32 %v1253, 0.0
        %v1256 = vmax.f32 %v1254, 0.0
        %v1257 = vmax.f32 %v1065, %v1255
        %v1258 = vmax.f32 %v1066, %v1256
        %1259 = vset.pattern.permute.xlu0 4
        %1260 = vperm.xlu0 %1259, %v479
        %v1261 = vpop.permute.xlu0 %1260
        %1262 = vset.pattern.permute.xlu0 4
        %1263 = vperm.xlu0 %1262, %v480
        %v1264 = vpop.permute.xlu0 %1263
        %vm1265 = vcmp.eq.s32.totalorder %v1261, %v484
        %vm1266 = vcmp.eq.s32.totalorder %v1264, %v484
        %v1267 = vsel %vm1265, 1, 0
        %v1268 = vsel %vm1266, 1, 0
        %v1269 = vcvt.s32.f32 %v1267
        %v1270 = vcvt.s32.f32 %v1268
        %1271 = vset.pattern.permute.xlu0 4
        %1272 = vperm.xlu0 %1271, %v481
        %v1273 = vpop.permute.xlu0 %1272
        %1274 = vset.pattern.permute.xlu0 4
        %1275 = vperm.xlu0 %1274, %v482
        %v1276 = vpop.permute.xlu0 %1275
        %vm1277 = vcmp.eq.s32.totalorder %v1273, %v484
        %vm1278 = vcmp.eq.s32.totalorder %v1276, %v484
        %v1279 = vsel %vm1277, 1, 0
        %v1280 = vsel %vm1278, 1, 0
        %v1281 = vcvt.s32.f32 %v1279
        %v1282 = vcvt.s32.f32 %v1280
        %v1284 = vsel %vm516, %v1281, 0
        %v1287 = vsel %vm516, %v1282, 0
        %1289 = vmatprep.subr.mxu0 0.0
        %1290 = vmatpush1.msra.mxu0 %v470
        %1291 = vmatprep.subr.mxu0 0.0
        %1292 = vmatpush1.msra.mxu0 %v475
        %1293 = vmatprep.subr.mxu0 0.0
        %1294 = vmatpush1.msra.mxu0 0.0
        %1295 = vmatprep.subr.mxu0 0.0
        %1296 = vmatpush1.msra.mxu0 0.0
        %1297 = vmatprep.subr.mxu0 0.0
        %1298 = vmatpush1.msra.mxu0 0.0
        %1299 = vmatprep.subr.mxu0 0.0
        %1300 = vmatpush1.msra.mxu0 0.0
        %1301 = vmatprep.subr.mxu0 0.0
        %1302 = vmatpush1.msra.mxu0 0.0
        %1303 = vmatprep.subr.mxu0 0.0
        %1304 = vmatpush1.msra.mxu0 0.0
        %1305 = vmatprep.subr.mxu0 0.0
        %1306 = vmatpush1.msra.mxu0 0.0
        %1307 = vmatprep.subr.mxu0 0.0
        %1308 = vmatpush1.msra.mxu0 0.0
        %1309 = vmatprep.subr.mxu0 0.0
        %1310 = vmatpush1.msra.mxu0 0.0
        %1311 = vmatprep.subr.mxu0 0.0
        %1312 = vmatpush1.msra.mxu0 0.0
        %1313 = vmatprep.subr.mxu0 0.0
        %1314 = vmatpush1.msra.mxu0 0.0
        %1315 = vmatprep.subr.mxu0 0.0
        %1316 = vmatpush1.msra.mxu0 0.0
        %1317 = vmatprep.subr.mxu0 0.0
        %1318 = vmatpush1.msra.mxu0 0.0
        %1319 = vmatprep.subr.mxu0 0.0
        %1320 = vmatpush1.msra.mxu0 0.0
        %1321 = vmatprep.subr.mxu0 0.0
        %1322 = vmatpush1.msra.mxu0 0.0
        %1323 = vmatprep.subr.mxu0 0.0
        %1324 = vmatpush1.msra.mxu0 0.0
        %1325 = vmatprep.subr.mxu0 0.0
        %1326 = vmatpush1.msra.mxu0 0.0
        %1327 = vmatprep.subr.mxu0 0.0
        %1328 = vmatpush1.msra.mxu0 0.0
        %1329 = vmatprep.subr.mxu0 0.0
        %1330 = vmatpush1.msra.mxu0 0.0
        %1331 = vmatprep.subr.mxu0 0.0
        %1332 = vmatpush1.msra.mxu0 0.0
        %1333 = vmatprep.subr.mxu0 0.0
        %1334 = vmatpush1.msra.mxu0 0.0
        %1335 = vmatprep.subr.mxu0 0.0
        %1336 = vmatpush1.msra.mxu0 0.0
        %1337 = vmatprep.subr.mxu0 0.0
        %1338 = vmatpush1.msra.mxu0 0.0
        %1339 = vmatprep.subr.mxu0 0.0
        %1340 = vmatpush1.msra.mxu0 0.0
        %1341 = vmatprep.subr.mxu0 0.0
        %1342 = vmatpush1.msra.mxu0 0.0
        %1343 = vmatprep.subr.mxu0 0.0
        %1344 = vmatpush1.msra.mxu0 0.0
        %1345 = vmatprep.subr.mxu0 0.0
        %1346 = vmatpush1.msra.mxu0 0.0
        %1347 = vmatprep.subr.mxu0 0.0
        %1348 = vmatpush1.msra.mxu0 0.0
        %1349 = vmatprep.subr.mxu0 0.0
        %1350 = vmatpush1.msra.mxu0 0.0
        %1351 = vmatprep.subr.mxu0 0.0
        %1352 = vmatpush1.msra.mxu0 0.0
        %1353 = vmatprep.mubr.f32.mxu0 0.0
        %1354 = vmatmul.mubr.f32.gmra.mrb[0].mxu0 %v1284
        %v1355 = vpop.f32.mrb[0].mxu0
        %v1356 = vadd.f32 0.0, %v1355
        %v1357 = vpop.f32.mrb[0].mxu0
        %1358 = vmatprep.mubr.f32.mxu0 0.0
        %1359 = vmatmul.mubr.f32.gmra.mrb[0].mxu0 %v1287
        %v1360 = vpop.f32.mrb[0].mxu0
        %v1361 = vadd.f32 0.0, %v1360
        %v1362 = vpop.f32.mrb[0].mxu0
        %1363 = vdwg.mxu0
        %v1365 = vsel %vm516, %v1269, 0
        %v1368 = vsel %vm516, %v1270, 0
        %1370 = vmatprep.subr.mxu0 0.0
        %1371 = vmatpush1.msra.mxu0 %v391
        %1372 = vmatprep.subr.mxu0 0.0
        %1373 = vmatpush1.msra.mxu0 %v396
        %1374 = vmatprep.subr.mxu0 0.0
        %1375 = vmatpush1.msra.mxu0 0.0
        %1376 = vmatprep.subr.mxu0 0.0
        %1377 = vmatpush1.msra.mxu0 0.0
        %1378 = vmatprep.subr.mxu0 0.0
        %1379 = vmatpush1.msra.mxu0 0.0
        %1380 = vmatprep.subr.mxu0 0.0
        %1381 = vmatpush1.msra.mxu0 0.0
        %1382 = vmatprep.subr.mxu0 0.0
        %1383 = vmatpush1.msra.mxu0 0.0
        %1384 = vmatprep.subr.mxu0 0.0
        %1385 = vmatpush1.msra.mxu0 0.0
        %1386 = vmatprep.subr.mxu0 0.0
        %1387 = vmatpush1.msra.mxu0 0.0
        %1388 = vmatprep.subr.mxu0 0.0
        %1389 = vmatpush1.msra.mxu0 0.0
        %1390 = vmatprep.subr.mxu0 0.0
        %1391 = vmatpush1.msra.mxu0 0.0
        %1392 = vmatprep.subr.mxu0 0.0
        %1393 = vmatpush1.msra.mxu0 0.0
        %1394 = vmatprep.subr.mxu0 0.0
        %1395 = vmatpush1.msra.mxu0 0.0
        %1396 = vmatprep.subr.mxu0 0.0
        %1397 = vmatpush1.msra.mxu0 0.0
        %1398 = vmatprep.subr.mxu0 0.0
        %1399 = vmatpush1.msra.mxu0 0.0
        %1400 = vmatprep.subr.mxu0 0.0
        %1401 = vmatpush1.msra.mxu0 0.0
        %1402 = vmatprep.subr.mxu0 0.0
        %1403 = vmatpush1.msra.mxu0 0.0
        %1404 = vmatprep.subr.mxu0 0.0
        %1405 = vmatpush1.msra.mxu0 0.0
        %1406 = vmatprep.subr.mxu0 0.0
        %1407 = vmatpush1.msra.mxu0 0.0
        %1408 = vmatprep.subr.mxu0 0.0
        %1409 = vmatpush1.msra.mxu0 0.0
        %1410 = vmatprep.subr.mxu0 0.0
        %1411 = vmatpush1.msra.mxu0 0.0
        %1412 = vmatprep.subr.mxu0 0.0
        %1413 = vmatpush1.msra.mxu0 0.0
        %1414 = vmatprep.subr.mxu0 0.0
        %1415 = vmatpush1.msra.mxu0 0.0
        %1416 = vmatprep.subr.mxu0 0.0
        %1417 = vmatpush1.msra.mxu0 0.0
        %1418 = vmatprep.subr.mxu0 0.0
        %1419 = vmatpush1.msra.mxu0 0.0
        %1420 = vmatprep.subr.mxu0 0.0
        %1421 = vmatpush1.msra.mxu0 0.0
        %1422 = vmatprep.subr.mxu0 0.0
        %1423 = vmatpush1.msra.mxu0 0.0
        %1424 = vmatprep.subr.mxu0 0.0
        %1425 = vmatpush1.msra.mxu0 0.0
        %1426 = vmatprep.subr.mxu0 0.0
        %1427 = vmatpush1.msra.mxu0 0.0
        %1428 = vmatprep.subr.mxu0 0.0
        %1429 = vmatpush1.msra.mxu0 0.0
        %1430 = vmatprep.subr.mxu0 0.0
        %1431 = vmatpush1.msra.mxu0 0.0
        %1432 = vmatprep.subr.mxu0 0.0
        %1433 = vmatpush1.msra.mxu0 0.0
        %1434 = vmatprep.mubr.f32.mxu0 0.0
        %1435 = vmatmul.mubr.f32.gmra.mrb[0].mxu0 %v1365
        %v1436 = vpop.f32.mrb[0].mxu0
        %v1437 = vadd.f32 %v1356, %v1436
        %v1438 = vpop.f32.mrb[0].mxu0
        %1439 = vmatprep.mubr.f32.mxu0 0.0
        %1440 = vmatmul.mubr.f32.gmra.mrb[0].mxu0 %v1368
        %v1441 = vpop.f32.mrb[0].mxu0
        %v1442 = vadd.f32 %v1361, %v1441
        %v1443 = vpop.f32.mrb[0].mxu0
        %1444 = vdwg.mxu0
        %v1445 = vadd.f32 %v1437, %v490
        %v1446 = vadd.f32 %v1442, %v490
        %v1447 = vmax.f32 %v1445, 0.0
        %v1448 = vmax.f32 %v1446, 0.0
        %v1449 = vmax.f32 %v1257, %v1447
        %v1450 = vmax.f32 %v1258, %v1448
        %1451 = vset.pattern.permute.xlu0 5
        %1452 = vperm.xlu0 %1451, %v479
        %v1453 = vpop.permute.xlu0 %1452
        %1454 = vset.pattern.permute.xlu0 5
        %1455 = vperm.xlu0 %1454, %v480
        %v1456 = vpop.permute.xlu0 %1455
        %vm1457 = vcmp.eq.s32.totalorder %v1453, %v484
        %vm1458 = vcmp.eq.s32.totalorder %v1456, %v484
        %v1459 = vsel %vm1457, 1, 0
        %v1460 = vsel %vm1458, 1, 0
        %v1461 = vcvt.s32.f32 %v1459
        %v1462 = vcvt.s32.f32 %v1460
        %1463 = vset.pattern.permute.xlu0 5
        %1464 = vperm.xlu0 %1463, %v481
        %v1465 = vpop.permute.xlu0 %1464
        %1466 = vset.pattern.permute.xlu0 5
        %1467 = vperm.xlu0 %1466, %v482
        %v1468 = vpop.permute.xlu0 %1467
        %vm1469 = vcmp.eq.s32.totalorder %v1465, %v484
        %vm1470 = vcmp.eq.s32.totalorder %v1468, %v484
        %v1471 = vsel %vm1469, 1, 0
        %v1472 = vsel %vm1470, 1, 0
        %v1473 = vcvt.s32.f32 %v1471
        %v1474 = vcvt.s32.f32 %v1472
        %v1476 = vsel %vm516, %v1473, 0
        %v1479 = vsel %vm516, %v1474, 0
        %1481 = vmatprep.subr.mxu0 0.0
        %1482 = vmatpush1.msra.mxu0 %v470
        %1483 = vmatprep.subr.mxu0 0.0
        %1484 = vmatpush1.msra.mxu0 %v475
        %1485 = vmatprep.subr.mxu0 0.0
        %1486 = vmatpush1.msra.mxu0 0.0
        %1487 = vmatprep.subr.mxu0 0.0
        %1488 = vmatpush1.msra.mxu0 0.0
        %1489 = vmatprep.subr.mxu0 0.0
        %1490 = vmatpush1.msra.mxu0 0.0
        %1491 = vmatprep.subr.mxu0 0.0
        %1492 = vmatpush1.msra.mxu0 0.0
        %1493 = vmatprep.subr.mxu0 0.0
        %1494 = vmatpush1.msra.mxu0 0.0
        %1495 = vmatprep.subr.mxu0 0.0
        %1496 = vmatpush1.msra.mxu0 0.0
        %1497 = vmatprep.subr.mxu0 0.0
        %1498 = vmatpush1.msra.mxu0 0.0
        %1499 = vmatprep.subr.mxu0 0.0
        %1500 = vmatpush1.msra.mxu0 0.0
        %1501 = vmatprep.subr.mxu0 0.0
        %1502 = vmatpush1.msra.mxu0 0.0
        %1503 = vmatprep.subr.mxu0 0.0
        %1504 = vmatpush1.msra.mxu0 0.0
        %1505 = vmatprep.subr.mxu0 0.0
        %1506 = vmatpush1.msra.mxu0 0.0
        %1507 = vmatprep.subr.mxu0 0.0
        %1508 = vmatpush1.msra.mxu0 0.0
        %1509 = vmatprep.subr.mxu0 0.0
        %1510 = vmatpush1.msra.mxu0 0.0
        %1511 = vmatprep.subr.mxu0 0.0
        %1512 = vmatpush1.msra.mxu0 0.0
        %1513 = vmatprep.subr.mxu0 0.0
        %1514 = vmatpush1.msra.mxu0 0.0
        %1515 = vmatprep.subr.mxu0 0.0
        %1516 = vmatpush1.msra.mxu0 0.0
        %1517 = vmatprep.subr.mxu0 0.0
        %1518 = vmatpush1.msra.mxu0 0.0
        %1519 = vmatprep.subr.mxu0 0.0
        %1520 = vmatpush1.msra.mxu0 0.0
        %1521 = vmatprep.subr.mxu0 0.0
        %1522 = vmatpush1.msra.mxu0 0.0
        %1523 = vmatprep.subr.mxu0 0.0
        %1524 = vmatpush1.msra.mxu0 0.0
        %1525 = vmatprep.subr.mxu0 0.0
        %1526 = vmatpush1.msra.mxu0 0.0
        %1527 = vmatprep.subr.mxu0 0.0
        %1528 = vmatpush1.msra.mxu0 0.0
        %1529 = vmatprep.subr.mxu0 0.0
        %1530 = vmatpush1.msra.mxu0 0.0
        %1531 = vmatprep.subr.mxu0 0.0
        %1532 = vmatpush1.msra.mxu0 0.0
        %1533 = vmatprep.subr.mxu0 0.0
        %1534 = vmatpush1.msra.mxu0 0.0
        %1535 = vmatprep.subr.mxu0 0.0
        %1536 = vmatpush1.msra.mxu0 0.0
        %1537 = vmatprep.subr.mxu0 0.0
        %1538 = vmatpush1.msra.mxu0 0.0
        %1539 = vmatprep.subr.mxu0 0.0
        %1540 = vmatpush1.msra.mxu0 0.0
        %1541 = vmatprep.subr.mxu0 0.0
        %1542 = vmatpush1.msra.mxu0 0.0
        %1543 = vmatprep.subr.mxu0 0.0
        %1544 = vmatpush1.msra.mxu0 0.0
        %1545 = vmatprep.mubr.f32.mxu0 0.0
        %1546 = vmatmul.mubr.f32.gmra.mrb[0].mxu0 %v1476
        %v1547 = vpop.f32.mrb[0].mxu0
        %v1548 = vadd.f32 0.0, %v1547
        %v1549 = vpop.f32.mrb[0].mxu0
        %1550 = vmatprep.mubr.f32.mxu0 0.0
        %1551 = vmatmul.mubr.f32.gmra.mrb[0].mxu0 %v1479
        %v1552 = vpop.f32.mrb[0].mxu0
        %v1553 = vadd.f32 0.0, %v1552
        %v1554 = vpop.f32.mrb[0].mxu0
        %1555 = vdwg.mxu0
        %v1557 = vsel %vm516, %v1461, 0
        %v1560 = vsel %vm516, %v1462, 0
        %1562 = vmatprep.subr.mxu0 0.0
        %1563 = vmatpush1.msra.mxu0 %v391
        %1564 = vmatprep.subr.mxu0 0.0
        %1565 = vmatpush1.msra.mxu0 %v396
        %1566 = vmatprep.subr.mxu0 0.0
        %1567 = vmatpush1.msra.mxu0 0.0
        %1568 = vmatprep.subr.mxu0 0.0
        %1569 = vmatpush1.msra.mxu0 0.0
        %1570 = vmatprep.subr.mxu0 0.0
        %1571 = vmatpush1.msra.mxu0 0.0
        %1572 = vmatprep.subr.mxu0 0.0
        %1573 = vmatpush1.msra.mxu0 0.0
        %1574 = vmatprep.subr.mxu0 0.0
        %1575 = vmatpush1.msra.mxu0 0.0
        %1576 = vmatprep.subr.mxu0 0.0
        %1577 = vmatpush1.msra.mxu0 0.0
        %1578 = vmatprep.subr.mxu0 0.0
        %1579 = vmatpush1.msra.mxu0 0.0
        %1580 = vmatprep.subr.mxu0 0.0
        %1581 = vmatpush1.msra.mxu0 0.0
        %1582 = vmatprep.subr.mxu0 0.0
        %1583 = vmatpush1.msra.mxu0 0.0
        %1584 = vmatprep.subr.mxu0 0.0
        %1585 = vmatpush1.msra.mxu0 0.0
        %1586 = vmatprep.subr.mxu0 0.0
        %1587 = vmatpush1.msra.mxu0 0.0
        %1588 = vmatprep.subr.mxu0 0.0
        %1589 = vmatpush1.msra.mxu0 0.0
        %1590 = vmatprep.subr.mxu0 0.0
        %1591 = vmatpush1.msra.mxu0 0.0
        %1592 = vmatprep.subr.mxu0 0.0
        %1593 = vmatpush1.msra.mxu0 0.0
        %1594 = vmatprep.subr.mxu0 0.0
        %1595 = vmatpush1.msra.mxu0 0.0
        %1596 = vmatprep.subr.mxu0 0.0
        %1597 = vmatpush1.msra.mxu0 0.0
        %1598 = vmatprep.subr.mxu0 0.0
        %1599 = vmatpush1.msra.mxu0 0.0
        %1600 = vmatprep.subr.mxu0 0.0
        %1601 = vmatpush1.msra.mxu0 0.0
        %1602 = vmatprep.subr.mxu0 0.0
        %1603 = vmatpush1.msra.mxu0 0.0
        %1604 = vmatprep.subr.mxu0 0.0
        %1605 = vmatpush1.msra.mxu0 0.0
        %1606 = vmatprep.subr.mxu0 0.0
        %1607 = vmatpush1.msra.mxu0 0.0
        %1608 = vmatprep.subr.mxu0 0.0
        %1609 = vmatpush1.msra.mxu0 0.0
        %1610 = vmatprep.subr.mxu0 0.0
        %1611 = vmatpush1.msra.mxu0 0.0
        %1612 = vmatprep.subr.mxu0 0.0
        %1613 = vmatpush1.msra.mxu0 0.0
        %1614 = vmatprep.subr.mxu0 0.0
        %1615 = vmatpush1.msra.mxu0 0.0
        %1616 = vmatprep.subr.mxu0 0.0
        %1617 = vmatpush1.msra.mxu0 0.0
        %1618 = vmatprep.subr.mxu0 0.0
        %1619 = vmatpush1.msra.mxu0 0.0
        %1620 = vmatprep.subr.mxu0 0.0
        %1621 = vmatpush1.msra.mxu0 0.0
        %1622 = vmatprep.subr.mxu0 0.0
        %1623 = vmatpush1.msra.mxu0 0.0
        %1624 = vmatprep.subr.mxu0 0.0
        %1625 = vmatpush1.msra.mxu0 0.0
        %1626 = vmatprep.mubr.f32.mxu0 0.0
        %1627 = vmatmul.mubr.f32.gmra.mrb[0].mxu0 %v1557
        %v1628 = vpop.f32.mrb[0].mxu0
        %v1629 = vadd.f32 %v1548, %v1628
        %v1630 = vpop.f32.mrb[0].mxu0
        %1631 = vmatprep.mubr.f32.mxu0 0.0
        %1632 = vmatmul.mubr.f32.gmra.mrb[0].mxu0 %v1560
        %v1633 = vpop.f32.mrb[0].mxu0
        %v1634 = vadd.f32 %v1553, %v1633
        %v1635 = vpop.f32.mrb[0].mxu0
        %1636 = vdwg.mxu0
        %v1637 = vadd.f32 %v1629, %v490
        %v1638 = vadd.f32 %v1634, %v490
        %v1639 = vmax.f32 %v1637, 0.0
        %v1640 = vmax.f32 %v1638, 0.0
        %v1641 = vmax.f32 %v1449, %v1639
        %v1642 = vmax.f32 %v1450, %v1640
        %1643 = vset.pattern.permute.xlu0 6
        %1644 = vperm.xlu0 %1643, %v479
        %v1645 = vpop.permute.xlu0 %1644
        %1646 = vset.pattern.permute.xlu0 6
        %1647 = vperm.xlu0 %1646, %v480
        %v1648 = vpop.permute.xlu0 %1647
        %vm1649 = vcmp.eq.s32.totalorder %v1645, %v484
        %vm1650 = vcmp.eq.s32.totalorder %v1648, %v484
        %v1651 = vsel %vm1649, 1, 0
        %v1652 = vsel %vm1650, 1, 0
        %v1653 = vcvt.s32.f32 %v1651
        %v1654 = vcvt.s32.f32 %v1652
        %1655 = vset.pattern.permute.xlu0 6
        %1656 = vperm.xlu0 %1655, %v481
        %v1657 = vpop.permute.xlu0 %1656
        %1658 = vset.pattern.permute.xlu0 6
        %1659 = vperm.xlu0 %1658, %v482
        %v1660 = vpop.permute.xlu0 %1659
        %vm1661 = vcmp.eq.s32.totalorder %v1657, %v484
        %vm1662 = vcmp.eq.s32.totalorder %v1660, %v484
        %v1663 = vsel %vm1661, 1, 0
        %v1664 = vsel %vm1662, 1, 0
        %v1665 = vcvt.s32.f32 %v1663
        %v1666 = vcvt.s32.f32 %v1664
        %v1668 = vsel %vm516, %v1665, 0
        %v1671 = vsel %vm516, %v1666, 0
        %1673 = vmatprep.subr.mxu0 0.0
        %1674 = vmatpush1.msra.mxu0 %v470
        %1675 = vmatprep.subr.mxu0 0.0
        %1676 = vmatpush1.msra.mxu0 %v475
        %1677 = vmatprep.subr.mxu0 0.0
        %1678 = vmatpush1.msra.mxu0 0.0
        %1679 = vmatprep.subr.mxu0 0.0
        %1680 = vmatpush1.msra.mxu0 0.0
        %1681 = vmatprep.subr.mxu0 0.0
        %1682 = vmatpush1.msra.mxu0 0.0
        %1683 = vmatprep.subr.mxu0 0.0
        %1684 = vmatpush1.msra.mxu0 0.0
        %1685 = vmatprep.subr.mxu0 0.0
        %1686 = vmatpush1.msra.mxu0 0.0
        %1687 = vmatprep.subr.mxu0 0.0
        %1688 = vmatpush1.msra.mxu0 0.0
        %1689 = vmatprep.subr.mxu0 0.0
        %1690 = vmatpush1.msra.mxu0 0.0
        %1691 = vmatprep.subr.mxu0 0.0
        %1692 = vmatpush1.msra.mxu0 0.0
        %1693 = vmatprep.subr.mxu0 0.0
        %1694 = vmatpush1.msra.mxu0 0.0
        %1695 = vmatprep.subr.mxu0 0.0
        %1696 = vmatpush1.msra.mxu0 0.0
        %1697 = vmatprep.subr.mxu0 0.0
        %1698 = vmatpush1.msra.mxu0 0.0
        %1699 = vmatprep.subr.mxu0 0.0
        %1700 = vmatpush1.msra.mxu0 0.0
        %1701 = vmatprep.subr.mxu0 0.0
        %1702 = vmatpush1.msra.mxu0 0.0
        %1703 = vmatprep.subr.mxu0 0.0
        %1704 = vmatpush1.msra.mxu0 0.0
        %1705 = vmatprep.subr.mxu0 0.0
        %1706 = vmatpush1.msra.mxu0 0.0
        %1707 = vmatprep.subr.mxu0 0.0
        %1708 = vmatpush1.msra.mxu0 0.0
        %1709 = vmatprep.subr.mxu0 0.0
        %1710 = vmatpush1.msra.mxu0 0.0
        %1711 = vmatprep.subr.mxu0 0.0
        %1712 = vmatpush1.msra.mxu0 0.0
        %1713 = vmatprep.subr.mxu0 0.0
        %1714 = vmatpush1.msra.mxu0 0.0
        %1715 = vmatprep.subr.mxu0 0.0
        %1716 = vmatpush1.msra.mxu0 0.0
        %1717 = vmatprep.subr.mxu0 0.0
        %1718 = vmatpush1.msra.mxu0 0.0
        %1719 = vmatprep.subr.mxu0 0.0
        %1720 = vmatpush1.msra.mxu0 0.0
        %1721 = vmatprep.subr.mxu0 0.0
        %1722 = vmatpush1.msra.mxu0 0.0
        %1723 = vmatprep.subr.mxu0 0.0
        %1724 = vmatpush1.msra.mxu0 0.0
        %1725 = vmatprep.subr.mxu0 0.0
        %1726 = vmatpush1.msra.mxu0 0.0
        %1727 = vmatprep.subr.mxu0 0.0
        %1728 = vmatpush1.msra.mxu0 0.0
        %1729 = vmatprep.subr.mxu0 0.0
        %1730 = vmatpush1.msra.mxu0 0.0
        %1731 = vmatprep.subr.mxu0 0.0
        %1732 = vmatpush1.msra.mxu0 0.0
        %1733 = vmatprep.subr.mxu0 0.0
        %1734 = vmatpush1.msra.mxu0 0.0
        %1735 = vmatprep.subr.mxu0 0.0
        %1736 = vmatpush1.msra.mxu0 0.0
        %1737 = vmatprep.mubr.f32.mxu0 0.0
        %1738 = vmatmul.mubr.f32.gmra.mrb[0].mxu0 %v1668
        %v1739 = vpop.f32.mrb[0].mxu0
        %v1740 = vadd.f32 0.0, %v1739
        %v1741 = vpop.f32.mrb[0].mxu0
        %1742 = vmatprep.mubr.f32.mxu0 0.0
        %1743 = vmatmul.mubr.f32.gmra.mrb[0].mxu0 %v1671
        %v1744 = vpop.f32.mrb[0].mxu0
        %v1745 = vadd.f32 0.0, %v1744
        %v1746 = vpop.f32.mrb[0].mxu0
        %1747 = vdwg.mxu0
        %v1749 = vsel %vm516, %v1653, 0
        %v1752 = vsel %vm516, %v1654, 0
        %1754 = vmatprep.subr.mxu0 0.0
        %1755 = vmatpush1.msra.mxu0 %v391
        %1756 = vmatprep.subr.mxu0 0.0
        %1757 = vmatpush1.msra.mxu0 %v396
        %1758 = vmatprep.subr.mxu0 0.0
        %1759 = vmatpush1.msra.mxu0 0.0
        %1760 = vmatprep.subr.mxu0 0.0
        %1761 = vmatpush1.msra.mxu0 0.0
        %1762 = vmatprep.subr.mxu0 0.0
        %1763 = vmatpush1.msra.mxu0 0.0
        %1764 = vmatprep.subr.mxu0 0.0
        %1765 = vmatpush1.msra.mxu0 0.0
        %1766 = vmatprep.subr.mxu0 0.0
        %1767 = vmatpush1.msra.mxu0 0.0
        %1768 = vmatprep.subr.mxu0 0.0
        %1769 = vmatpush1.msra.mxu0 0.0
        %1770 = vmatprep.subr.mxu0 0.0
        %1771 = vmatpush1.msra.mxu0 0.0
        %1772 = vmatprep.subr.mxu0 0.0
        %1773 = vmatpush1.msra.mxu0 0.0
        %1774 = vmatprep.subr.mxu0 0.0
        %1775 = vmatpush1.msra.mxu0 0.0
        %1776 = vmatprep.subr.mxu0 0.0
        %1777 = vmatpush1.msra.mxu0 0.0
        %1778 = vmatprep.subr.mxu0 0.0
        %1779 = vmatpush1.msra.mxu0 0.0
        %1780 = vmatprep.subr.mxu0 0.0
        %1781 = vmatpush1.msra.mxu0 0.0
        %1782 = vmatprep.subr.mxu0 0.0
        %1783 = vmatpush1.msra.mxu0 0.0
        %1784 = vmatprep.subr.mxu0 0.0
        %1785 = vmatpush1.msra.mxu0 0.0
        %1786 = vmatprep.subr.mxu0 0.0
        %1787 = vmatpush1.msra.mxu0 0.0
        %1788 = vmatprep.subr.mxu0 0.0
        %1789 = vmatpush1.msra.mxu0 0.0
        %1790 = vmatprep.subr.mxu0 0.0
        %1791 = vmatpush1.msra.mxu0 0.0
        %1792 = vmatprep.subr.mxu0 0.0
        %1793 = vmatpush1.msra.mxu0 0.0
        %1794 = vmatprep.subr.mxu0 0.0
        %1795 = vmatpush1.msra.mxu0 0.0
        %1796 = vmatprep.subr.mxu0 0.0
        %1797 = vmatpush1.msra.mxu0 0.0
        %1798 = vmatprep.subr.mxu0 0.0
        %1799 = vmatpush1.msra.mxu0 0.0
        %1800 = vmatprep.subr.mxu0 0.0
        %1801 = vmatpush1.msra.mxu0 0.0
        %1802 = vmatprep.subr.mxu0 0.0
        %1803 = vmatpush1.msra.mxu0 0.0
        %1804 = vmatprep.subr.mxu0 0.0
        %1805 = vmatpush1.msra.mxu0 0.0
        %1806 = vmatprep.subr.mxu0 0.0
        %1807 = vmatpush1.msra.mxu0 0.0
        %1808 = vmatprep.subr.mxu0 0.0
        %1809 = vmatpush1.msra.mxu0 0.0
        %1810 = vmatprep.subr.mxu0 0.0
        %1811 = vmatpush1.msra.mxu0 0.0
        %1812 = vmatprep.subr.mxu0 0.0
        %1813 = vmatpush1.msra.mxu0 0.0
        %1814 = vmatprep.subr.mxu0 0.0
        %1815 = vmatpush1.msra.mxu0 0.0
        %1816 = vmatprep.subr.mxu0 0.0
        %1817 = vmatpush1.msra.mxu0 0.0
        %1818 = vmatprep.mubr.f32.mxu0 0.0
        %1819 = vmatmul.mubr.f32.gmra.mrb[0].mxu0 %v1749
        %v1820 = vpop.f32.mrb[0].mxu0
        %v1821 = vadd.f32 %v1740, %v1820
        %v1822 = vpop.f32.mrb[0].mxu0
        %1823 = vmatprep.mubr.f32.mxu0 0.0
        %1824 = vmatmul.mubr.f32.gmra.mrb[0].mxu0 %v1752
        %v1825 = vpop.f32.mrb[0].mxu0
        %v1826 = vadd.f32 %v1745, %v1825
        %v1827 = vpop.f32.mrb[0].mxu0
        %1828 = vdwg.mxu0
        %v1829 = vadd.f32 %v1821, %v490
        %v1830 = vadd.f32 %v1826, %v490
        %v1831 = vmax.f32 %v1829, 0.0
        %v1832 = vmax.f32 %v1830, 0.0
        %v1833 = vmax.f32 %v1641, %v1831
        %v1834 = vmax.f32 %v1642, %v1832
        %1835 = vset.pattern.permute.xlu0 7
        %1836 = vperm.xlu0 %1835, %v479
        %v1837 = vpop.permute.xlu0 %1836
        %1838 = vset.pattern.permute.xlu0 7
        %1839 = vperm.xlu0 %1838, %v480
        %v1840 = vpop.permute.xlu0 %1839
        %vm1841 = vcmp.eq.s32.totalorder %v1837, %v484
        %vm1842 = vcmp.eq.s32.totalorder %v1840, %v484
        %v1843 = vsel %vm1841, 1, 0
        %v1844 = vsel %vm1842, 1, 0
        %v1845 = vcvt.s32.f32 %v1843
        %v1846 = vcvt.s32.f32 %v1844
        %1847 = vset.pattern.permute.xlu0 7
        %1848 = vperm.xlu0 %1847, %v481
        %v1849 = vpop.permute.xlu0 %1848
        %1850 = vset.pattern.permute.xlu0 7
        %1851 = vperm.xlu0 %1850, %v482
        %v1852 = vpop.permute.xlu0 %1851
        %vm1853 = vcmp.eq.s32.totalorder %v1849, %v484
        %vm1854 = vcmp.eq.s32.totalorder %v1852, %v484
        %v1855 = vsel %vm1853, 1, 0
        %v1856 = vsel %vm1854, 1, 0
        %v1857 = vcvt.s32.f32 %v1855
        %v1858 = vcvt.s32.f32 %v1856
        %v1860 = vsel %vm516, %v1857, 0
        %v1863 = vsel %vm516, %v1858, 0
        %1865 = vmatprep.subr.mxu0 0.0
        %1866 = vmatpush1.msra.mxu0 %v470
        %1867 = vmatprep.subr.mxu0 0.0
        %1868 = vmatpush1.msra.mxu0 %v475
        %1869 = vmatprep.subr.mxu0 0.0
        %1870 = vmatpush1.msra.mxu0 0.0
        %1871 = vmatprep.subr.mxu0 0.0
        %1872 = vmatpush1.msra.mxu0 0.0
        %1873 = vmatprep.subr.mxu0 0.0
        %1874 = vmatpush1.msra.mxu0 0.0
        %1875 = vmatprep.subr.mxu0 0.0
        %1876 = vmatpush1.msra.mxu0 0.0
        %1877 = vmatprep.subr.mxu0 0.0
        %1878 = vmatpush1.msra.mxu0 0.0
        %1879 = vmatprep.subr.mxu0 0.0
        %1880 = vmatpush1.msra.mxu0 0.0
        %1881 = vmatprep.subr.mxu0 0.0
        %1882 = vmatpush1.msra.mxu0 0.0
        %1883 = vmatprep.subr.mxu0 0.0
        %1884 = vmatpush1.msra.mxu0 0.0
        %1885 = vmatprep.subr.mxu0 0.0
        %1886 = vmatpush1.msra.mxu0 0.0
        %1887 = vmatprep.subr.mxu0 0.0
        %1888 = vmatpush1.msra.mxu0 0.0
        %1889 = vmatprep.subr.mxu0 0.0
        %1890 = vmatpush1.msra.mxu0 0.0
        %1891 = vmatprep.subr.mxu0 0.0
        %1892 = vmatpush1.msra.mxu0 0.0
        %1893 = vmatprep.subr.mxu0 0.0
        %1894 = vmatpush1.msra.mxu0 0.0
        %1895 = vmatprep.subr.mxu0 0.0
        %1896 = vmatpush1.msra.mxu0 0.0
        %1897 = vmatprep.subr.mxu0 0.0
        %1898 = vmatpush1.msra.mxu0 0.0
        %1899 = vmatprep.subr.mxu0 0.0
        %1900 = vmatpush1.msra.mxu0 0.0
        %1901 = vmatprep.subr.mxu0 0.0
        %1902 = vmatpush1.msra.mxu0 0.0
        %1903 = vmatprep.subr.mxu0 0.0
        %1904 = vmatpush1.msra.mxu0 0.0
        %1905 = vmatprep.subr.mxu0 0.0
        %1906 = vmatpush1.msra.mxu0 0.0
        %1907 = vmatprep.subr.mxu0 0.0
        %1908 = vmatpush1.msra.mxu0 0.0
        %1909 = vmatprep.subr.mxu0 0.0
        %1910 = vmatpush1.msra.mxu0 0.0
        %1911 = vmatprep.subr.mxu0 0.0
        %1912 = vmatpush1.msra.mxu0 0.0
        %1913 = vmatprep.subr.mxu0 0.0
        %1914 = vmatpush1.msra.mxu0 0.0
        %1915 = vmatprep.subr.mxu0 0.0
        %1916 = vmatpush1.msra.mxu0 0.0
        %1917 = vmatprep.subr.mxu0 0.0
        %1918 = vmatpush1.msra.mxu0 0.0
        %1919 = vmatprep.subr.mxu0 0.0
        %1920 = vmatpush1.msra.mxu0 0.0
        %1921 = vmatprep.subr.mxu0 0.0
        %1922 = vmatpush1.msra.mxu0 0.0
        %1923 = vmatprep.subr.mxu0 0.0
        %1924 = vmatpush1.msra.mxu0 0.0
        %1925 = vmatprep.subr.mxu0 0.0
        %1926 = vmatpush1.msra.mxu0 0.0
        %1927 = vmatprep.subr.mxu0 0.0
        %1928 = vmatpush1.msra.mxu0 0.0
        %1929 = vmatprep.mubr.f32.mxu0 0.0
        %1930 = vmatmul.mubr.f32.gmra.mrb[0].mxu0 %v1860
        %v1931 = vpop.f32.mrb[0].mxu0
        %v1932 = vadd.f32 0.0, %v1931
        %v1933 = vpop.f32.mrb[0].mxu0
        %1934 = vmatprep.mubr.f32.mxu0 0.0
        %1935 = vmatmul.mubr.f32.gmra.mrb[0].mxu0 %v1863
        %v1936 = vpop.f32.mrb[0].mxu0
        %v1937 = vadd.f32 0.0, %v1936
        %v1938 = vpop.f32.mrb[0].mxu0
        %1939 = vdwg.mxu0
        %v1941 = vsel %vm516, %v1845, 0
        %v1944 = vsel %vm516, %v1846, 0
        %1946 = vmatprep.subr.mxu0 0.0
        %1947 = vmatpush1.msra.mxu0 %v391
        %1948 = vmatprep.subr.mxu0 0.0
        %1949 = vmatpush1.msra.mxu0 %v396
        %1950 = vmatprep.subr.mxu0 0.0
        %1951 = vmatpush1.msra.mxu0 0.0
        %1952 = vmatprep.subr.mxu0 0.0
        %1953 = vmatpush1.msra.mxu0 0.0
        %1954 = vmatprep.subr.mxu0 0.0
        %1955 = vmatpush1.msra.mxu0 0.0
        %1956 = vmatprep.subr.mxu0 0.0
        %1957 = vmatpush1.msra.mxu0 0.0
        %1958 = vmatprep.subr.mxu0 0.0
        %1959 = vmatpush1.msra.mxu0 0.0
        %1960 = vmatprep.subr.mxu0 0.0
        %1961 = vmatpush1.msra.mxu0 0.0
        %1962 = vmatprep.subr.mxu0 0.0
        %1963 = vmatpush1.msra.mxu0 0.0
        %1964 = vmatprep.subr.mxu0 0.0
        %1965 = vmatpush1.msra.mxu0 0.0
        %1966 = vmatprep.subr.mxu0 0.0
        %1967 = vmatpush1.msra.mxu0 0.0
        %1968 = vmatprep.subr.mxu0 0.0
        %1969 = vmatpush1.msra.mxu0 0.0
        %1970 = vmatprep.subr.mxu0 0.0
        %1971 = vmatpush1.msra.mxu0 0.0
        %1972 = vmatprep.subr.mxu0 0.0
        %1973 = vmatpush1.msra.mxu0 0.0
        %1974 = vmatprep.subr.mxu0 0.0
        %1975 = vmatpush1.msra.mxu0 0.0
        %1976 = vmatprep.subr.mxu0 0.0
        %1977 = vmatpush1.msra.mxu0 0.0
        %1978 = vmatprep.subr.mxu0 0.0
        %1979 = vmatpush1.msra.mxu0 0.0
        %1980 = vmatprep.subr.mxu0 0.0
        %1981 = vmatpush1.msra.mxu0 0.0
        %1982 = vmatprep.subr.mxu0 0.0
        %1983 = vmatpush1.msra.mxu0 0.0
        %1984 = vmatprep.subr.mxu0 0.0
        %1985 = vmatpush1.msra.mxu0 0.0
        %1986 = vmatprep.subr.mxu0 0.0
        %1987 = vmatpush1.msra.mxu0 0.0
        %1988 = vmatprep.subr.mxu0 0.0
        %1989 = vmatpush1.msra.mxu0 0.0
        %1990 = vmatprep.subr.mxu0 0.0
        %1991 = vmatpush1.msra.mxu0 0.0
        %1992 = vmatprep.subr.mxu0 0.0
        %1993 = vmatpush1.msra.mxu0 0.0
        %1994 = vmatprep.subr.mxu0 0.0
        %1995 = vmatpush1.msra.mxu0 0.0
        %1996 = vmatprep.subr.mxu0 0.0
        %1997 = vmatpush1.msra.mxu0 0.0
        %1998 = vmatprep.subr.mxu0 0.0
        %1999 = vmatpush1.msra.mxu0 0.0
        %2000 = vmatprep.subr.mxu0 0.0
        %2001 = vmatpush1.msra.mxu0 0.0
        %2002 = vmatprep.subr.mxu0 0.0
        %2003 = vmatpush1.msra.mxu0 0.0
        %2004 = vmatprep.subr.mxu0 0.0
        %2005 = vmatpush1.msra.mxu0 0.0
        %2006 = vmatprep.subr.mxu0 0.0
        %2007 = vmatpush1.msra.mxu0 0.0
        %2008 = vmatprep.subr.mxu0 0.0
        %2009 = vmatpush1.msra.mxu0 0.0
        %2010 = vmatprep.mubr.f32.mxu0 0.0
        %2011 = vmatmul.mubr.f32.gmra.mrb[0].mxu0 %v1941
        %v2012 = vpop.f32.mrb[0].mxu0
        %v2013 = vadd.f32 %v1932, %v2012
        %v2014 = vpop.f32.mrb[0].mxu0
        %2015 = vmatprep.mubr.f32.mxu0 0.0
        %2016 = vmatmul.mubr.f32.gmra.mrb[0].mxu0 %v1944
        %v2017 = vpop.f32.mrb[0].mxu0
        %v2018 = vadd.f32 %v1937, %v2017
        %v2019 = vpop.f32.mrb[0].mxu0
        %2020 = vdwg.mxu0
        %v2021 = vadd.f32 %v2013, %v490
        %v2022 = vadd.f32 %v2018, %v490
        %v2023 = vmax.f32 %v2021, 0.0
        %v2024 = vmax.f32 %v2022, 0.0
        %v2025 = vmax.f32 %v1833, %v2023
        %v2026 = vmax.f32 %v1834, %v2024
        %2027 = vst [vmem:[%s302] sm:$0xff] %v2025
        %2028 = vst [vmem:[%s302 + $0x8] sm:$0xff] %v2026
        %s2029 = sand.u32 %s158, 1
        %s2030 = scalar_lea.sflag [#allocation4], %s2029
        %s2031 = sand.u32 %s158, 1
        %s2032 = smul.addr %s2031, 16
        %s2033 = scalar_lea.vmem [#allocation3], %s2032
        // Predicated region
        $region79: #{tpu_custom_call.1} parent=73 // pred_check
          %p2034 = pneg %p168
        $region80: #{tpu_custom_call.1} parent=73 // pred_check_branch
          %2036 = sbr.rel (%p2034) target = $region82
        $region81: #{tpu_custom_call.1} parent=73 // pred_region
          %s2037 = smul.u32 2, %s24
          %s2039 = ssub.s32 256, 256
          %2040 = vsyncadd %s2030, %s2039
          %s2041 = smul.addr %s23, 2
          %s2042 = sadd.s32 %s2037, %s2041
          %s2043 = smul.addr %s2042, 128
          %s2044 = scalar_lea.hbm %s5, %s2043
          %s2045 = sshll.u32 %s2033, 4
          %s2046 = int_to_ptr.vmem [resolvable:$true] %s2045
          %2051 = dma.vmem_to_hbm [thread:$0]  %s2046, 256, %s2044, %s2030, 128, 128, 8
        $region82: #{tpu_custom_call.1} parent=73 // pred_fallthru
          _
      $region74: #{tpu_custom_call.1} parent=5 // pred_fallthru
        _
      %p2052 = scmp.le.s32.totalorder 2, %s14
      // Predicated region
      $region83: #{tpu_custom_call.1} parent=5 // pred_check
        %p2053 = pneg %p2052
      $region84: #{tpu_custom_call.1} parent=5 // pred_check_branch
        %2055 = sbr.rel (%p2053) target = $region86
      $region85: #{tpu_custom_call.1} parent=5 // pred_region
        %s2056 = ssub.s32 %s14, 2
        // Predicated region
        $region87: #{tpu_custom_call.1} parent=85 // pred_check
          %p2057 = pneg %p174
        $region88: #{tpu_custom_call.1} parent=85 // pred_check_branch
          %2059 = sbr.rel (%p2057) target = $region90
        $region89: #{tpu_custom_call.1} parent=85 // pred_region
          %s2060 = sand.u32 %s159, 1
          %s2061 = scalar_lea.sflag [#allocation4], %s2060
          %s2062 = sand.u32 %s159, 1
          %s2063 = smul.addr %s2062, 16
          %s2064 = scalar_lea.vmem [#allocation3], %s2063
          %2065 = dma.done %s2061, 256
        $region90: #{tpu_custom_call.1} parent=85 // pred_fallthru
          _
      $region86: #{tpu_custom_call.1} parent=5 // pred_fallthru
        _
    $region6: #{tpu_custom_call.1} parent=1 // loop_footer
      %s18 = sadd.s32 1, %s14
    $region7: #{tpu_custom_call.1} parent=1 // loop_footer_branch
      %13 = sbr.rel target = $region3
    $region8: #{tpu_custom_call.1} parent=1 // loop_exit
      _
    %2066 = vsyncpa [#allocation4], 1
    %s2067 = scalar_lea.sflag [#allocation4], 1
    %2068 = vsyncpa %s2067, 1

</llo_original>
